<compile_context>
chip_gen: v7x
topology: tpu7x:2x2x1
jax: 0.10.0
libtpu: 0.0.40
codegen_flags: <defaults>
</compile_context>

<pallas_src>
import functools

import jax
import jax.numpy as jnp
from jax.experimental import pallas as pl
from jax.experimental.pallas import tpu as pltpu


def _round_up(x, m):
    return (x + m - 1) // m * m


def _pad_gate_cols(w, H, Hp):
    """(..., 4H) -> (..., 4Hp): each PyTorch gate block [i,f,g,o] placed at g*Hp."""
    if Hp == H:
        return w
    pad = [(0, 0)] * (w.ndim - 1) + [(0, Hp - H)]
    return jnp.concatenate(
        [jnp.pad(w[..., g * H:(g + 1) * H], pad) for g in range(4)], axis=-1)


# -----------------------------------------------------------------------------
# Pallas kernel: recurrent part of one LSTM layer.
# gx_ref : (chunk, BB, 4*Hp) f32  -- precomputed x-projection + bias (hoisted)
# whh_ref: (Hp, 4*Hp)        f32  -- recurrent weights (grid-invariant block)
# out_ref: (chunk, BB, Hp)   f32  -- hidden-state sequence for this chunk
# h_scr/c_scr: (BB, Hp) f32 scratch, carried across time-chunk grid iterations.
# -----------------------------------------------------------------------------
def _lstm_recurrent_kernel(gx_ref, whh_ref, out_ref, h_scr, c_scr, *, hidden, chunk):
    t = pl.program_id(1)

    # Zero (h0, c0) at the start of each batch block's time loop (PyTorch default).
    @pl.when(t == 0)
    def _():
        h_scr[...] = jnp.zeros_like(h_scr)
        c_scr[...] = jnp.zeros_like(c_scr)

    def step(j, carry):
        h_prev = h_scr[...]
        c_prev = c_scr[...]
        # Single MXU push per step: (BB, Hp) x (Hp, 4Hp), f32 in / f32 acc.
        gates = gx_ref[j] + jnp.dot(
            h_prev, whh_ref[...], preferred_element_type=jnp.float32)
        # Lane-aligned gate slices (hidden is a multiple of 128). f32 elementwise.
        i_g = jax.nn.sigmoid(gates[:, 0 * hidden:1 * hidden])
        f_g = jax.nn.sigmoid(gates[:, 1 * hidden:2 * hidden])
        g_g = jnp.tanh(gates[:, 2 * hidden:3 * hidden])
        o_g = jax.nn.sigmoid(gates[:, 3 * hidden:4 * hidden])
        c_new = f_g * c_prev + i_g * g_g
        h_new = o_g * jnp.tanh(c_new)
        h_scr[...] = h_new
        c_scr[...] = c_new
        out_ref[j] = h_new        # lane-dense, unmasked (Hp multiple of 128)
        return carry

    # Unrolled so the scheduler can overlap the matmul with the previous step's
    # elementwise tail; also bounds live ranges vs. a static Python loop.
    jax.lax.fori_loop(0, chunk, step, 0, unroll=True)


def _lstm_recurrence(gx, whh_t, *, hidden_p, chunk, batch_block=None):
    """gx: [Tp, Bp, 4*Hp] f32, whh_t: [Hp, 4*Hp] f32 -> [Tp, Bp, Hp] f32."""
    Tp, Bp, G = gx.shape
    assert G == 4 * hidden_p
    if batch_block is None:
        batch_block = Bp
    assert Bp % batch_block == 0 and Tp % chunk == 0
    nb = Bp // batch_block
    nt = Tp // chunk

    kernel = functools.partial(_lstm_recurrent_kernel, hidden=hidden_p, chunk=chunk)
    return pl.pallas_call(
        kernel,
        out_shape=jax.ShapeDtypeStruct((Tp, Bp, hidden_p), jnp.float32),
        grid_spec=pltpu.PrefetchScalarGridSpec(
            num_scalar_prefetch=0,
            grid=(nb, nt),
            in_specs=[
                # Precomputed gate slab: one chunk of time steps per grid step.
                pl.BlockSpec((chunk, batch_block, 4 * hidden_p),
                             lambda b, t: (t, b, 0)),
                # Invariant recurrent weights. On v7x with very large H, tile
                # along K to stay inside the 64 MiB VMEM budget.
                pl.BlockSpec((hidden_p, 4 * hidden_p), lambda b, t: (0, 0)),
            ],
            out_specs=pl.BlockSpec((chunk, batch_block, hidden_p),
                                   lambda b, t: (t, b, 0)),
            scratch_shapes=[
                pltpu.VMEM((batch_block, hidden_p), jnp.float32),  # h state
                pltpu.VMEM((batch_block, hidden_p), jnp.float32),  # c state
            ],
        ),
        compiler_params=pltpu.CompilerParams(
            # batch blocks are independent recurrences (megacore-splittable on
            # v7x); the time axis is a serial recurrence.
            dimension_semantics=("parallel", "arbitrary"),
            vmem_limit_bytes=64 * 1024 * 1024,
        ),
    )(gx, whh_t)


# -----------------------------------------------------------------------------
# EncoderRNN forward: stacked LSTM, returns encoded_input (last layer outputs).
# -----------------------------------------------------------------------------
def encoder_rnn_forward(x, kernel_params, *, hidden_size, chunk=8):
    """x: [B, T, input_size] f32 (batch_first). Returns [B, T, hidden_size] f32."""
    B, T, _ = x.shape
    hidden_p = kernel_params[0][1].shape[0]          # padded hidden width Hp
    Bp = _round_up(max(B, 1), 8)                     # f32 sublane alignment
    chunk = max(1, min(chunk, T))
    Tp = _round_up(T, chunk)

    # Pad batch / time once with zeros (padded rows never mix with real ones).
    xp = jnp.pad(x.astype(jnp.float32), ((0, Bp - B), (0, Tp - T), (0, 0)))

    h_seq = None                                     # time-major [Tp, Bp, Hp]
    for li, (wih_t, whh_t, bias) in enumerate(kernel_params):
        # Hoisted input projection for ALL time steps as one large f32 matmul;
        # output produced directly in time-major layout (no explicit transpose).
        if li == 0:
            gx = jnp.einsum('btd,dg->tbg', xp, wih_t,
                            preferred_element_type=jnp.float32)
        else:
            gx = jnp.einsum('tbh,hg->tbg', h_seq, wih_t,
                            preferred_element_type=jnp.float32)
        gx = gx + bias                               # folded (b_ih + b_hh)
        h_seq = _lstm_recurrence(gx, whh_t, hidden_p=hidden_p, chunk=chunk)

    # Single transpose in the whole pass: back to batch_first, drop padding.
    y = jnp.transpose(h_seq, (1, 0, 2))
    return y[:B, :T, :hidden_size]


# -----------------------------------------------------------------------------
# Parameter init (matches nn.LSTM shapes; uniform(-k, k), k = 1/sqrt(H)).
# Returns padded f32 kernel params and raw f32 params for the reference.
# -----------------------------------------------------------------------------
def init_encoder_params(key, input_size, hidden_size, num_layers):
    H = hidden_size
    Hp = _round_up(H, 128)                           # lane alignment
    k = 1.0 / float(H) ** 0.5
    kernel_params, ref_params = [], []
    for layer in range(num_layers):
        in_dim = input_size if layer == 0 else hidden_size
        key, k1, k2, k3, k4 = jax.random.split(key, 5)
        w_ih = jax.random.uniform(k1, (4 * H, in_dim), minval=-k, maxval=k,
                                  dtype=jnp.float32)
        w_hh = jax.random.uniform(k2, (4 * H, H), minval=-k, maxval=k,
                                  dtype=jnp.float32)
        b_ih = jax.random.uniform(k3, (4 * H,), minval=-k, maxval=k,
                                  dtype=jnp.float32)
        b_hh = jax.random.uniform(k4, (4 * H,), minval=-k, maxval=k,
                                  dtype=jnp.float32)
        ref_params.append((w_ih, w_hh, b_ih + b_hh))

        # Pre-transpose for x @ W^T form; pad gate blocks to lane-aligned Hp.
        wih_t = _pad_gate_cols(w_ih.T, H, Hp)                    # (in_dim, 4Hp)
        if layer > 0:                                            # padded hidden in
            wih_t = jnp.pad(wih_t, ((0, Hp - H), (0, 0)))        # (Hp, 4Hp)
        whh_t = _pad_gate_cols(w_hh.T, H, Hp)                    # (H, 4Hp)
        whh_t = jnp.pad(whh_t, ((0, Hp - H), (0, 0)))            # (Hp, 4Hp)
        bias = _pad_gate_cols((b_ih + b_hh)[None, :], H, Hp)[0]  # (4Hp,)
        kernel_params.append((wih_t.astype(jnp.float32),
                              whh_t.astype(jnp.float32),
                              bias.astype(jnp.float32)))
    return kernel_params, ref_params


# -----------------------------------------------------------------------------
# Pure-JAX f32 reference (lax.scan) for correctness check.
# -----------------------------------------------------------------------------
def lstm_ref(x, ref_params):
    h = jnp.transpose(x, (1, 0, 2))                  # [T, B, D]
    for (w_ih, w_hh, b) in ref_params:
        B = h.shape[1]
        H = w_hh.shape[1]

        def step(carry, xt):
            hp, cp = carry
            gates = xt @ w_ih.T + hp @ w_hh.T + b
            i_g, f_g, g_g, o_g = jnp.split(gates, 4, axis=-1)
            c = jax.nn.sigmoid(f_g) * cp + jax.nn.sigmoid(i_g) * jnp.tanh(g_g)
            hn = jax.nn.sigmoid(o_g) * jnp.tanh(c)
            return (hn, c), hn

        init = (jnp.zeros((B, H), jnp.float32), jnp.zeros((B, H), jnp.float32))
        _, h = jax.lax.scan(step, init, h)
    return jnp.transpose(h, (1, 0, 2))


if __name__ == "__main__":
    # Small shapes consistent with EncoderRNN(input_size, hidden_size, num_layers).
    B, T = 2, 8
    input_size, hidden_size, num_layers = 16, 32, 2

    key = jax.random.PRNGKey(0)
    k_x, k_p = jax.random.split(key)
    x = jax.random.normal(k_x, (B, T, input_size), dtype=jnp.float32)
    kernel_params, ref_params = init_encoder_params(
        k_p, input_size, hidden_size, num_layers)

    fwd = jax.jit(functools.partial(
        encoder_rnn_forward, hidden_size=hidden_size, chunk=8))
    out = jax.block_until_ready(fwd(x, kernel_params))

    ref = jax.block_until_ready(lstm_ref(x, ref_params))
    assert out.shape == (B, T, hidden_size)
    # Full f32 path -> tight tolerance.
    assert jnp.allclose(out, ref, atol=1e-4, rtol=1e-4), "mismatch vs reference"

    print("KERNEL_OK")
</pallas_src>

<mosaic_0001>
module attributes {stable_mosaic.version = 11 : i64} {
  func.func @_lstm_recurrent_kernel(%arg0: i32, %arg1: i32, %arg2: memref<8x8x512xf32, #tpu.memory_space<vmem>>, %arg3: memref<128x512xf32, #tpu.memory_space<vmem>>, %arg4: memref<8x8x128xf32, #tpu.memory_space<vmem>>, %arg5: memref<8x128xf32, #tpu.memory_space<vmem>>, %arg6: memref<8x128xf32, #tpu.memory_space<vmem>>) attributes {dimension_semantics = [#tpu.dimension_semantics<parallel>, #tpu.dimension_semantics<arbitrary>], iteration_bounds = array<i64: 1, 1>, scalar_prefetch = 0 : i64, scratch_operands = 2 : i64, tpu.core_type = #tpu.core_type<tc>, window_params = [{transform_indices = @transform_0, window_bounds = array<i64: 8, 8, 512>}, {pipeline_mode = #tpu.pipeline_mode<synchronous>, transform_indices = @transform_1, window_bounds = array<i64: 128, 512>}, {transform_indices = @transform_2, window_bounds = array<i64: 8, 8, 128>}]} {
    %c0_i32 = arith.constant 0 : i32
    %0 = arith.cmpi eq, %arg1, %c0_i32 : i32
    %1 = arith.extui %0 : i1 to i32
    %c0_i32_0 = arith.constant 0 : i32
    %2 = arith.cmpi ne, %1, %c0_i32_0 : i32
    scf.if %2 {
      %cst_144 = arith.constant 0.000000e+00 : f32
      %315 = vector.broadcast %cst_144 : f32 to vector<8x128xf32>
      %c0_145 = arith.constant 0 : index
      %c0_146 = arith.constant 0 : index
      %316 = vector.load %arg5[%c0_145, %c0_146] : memref<8x128xf32, #tpu.memory_space<vmem>>, vector<8x128xf32>
      tpu.vector_store %arg5[%c0_145, %c0_146], %315 {strides = array<i32>} : memref<8x128xf32, #tpu.memory_space<vmem>>, vector<8x128xf32>,
      %cst_147 = arith.constant 0.000000e+00 : f32
      %317 = vector.broadcast %cst_147 : f32 to vector<8x128xf32>
      %c0_148 = arith.constant 0 : index
      %c0_149 = arith.constant 0 : index
      %318 = vector.load %arg6[%c0_148, %c0_149] : memref<8x128xf32, #tpu.memory_space<vmem>>, vector<8x128xf32>
      tpu.vector_store %arg6[%c0_148, %c0_149], %317 {strides = array<i32>} : memref<8x128xf32, #tpu.memory_space<vmem>>, vector<8x128xf32>,
    } else {
    }
    %c0_i32_1 = arith.constant 0 : i32
    %c0 = arith.constant 0 : index
    %c0_2 = arith.constant 0 : index
    %3 = vector.load %arg5[%c0, %c0_2] : memref<8x128xf32, #tpu.memory_space<vmem>>, vector<8x128xf32>
    %c0_3 = arith.constant 0 : index
    %c0_4 = arith.constant 0 : index
    %4 = vector.load %arg6[%c0_3, %c0_4] : memref<8x128xf32, #tpu.memory_space<vmem>>, vector<8x128xf32>
    %5 = arith.index_cast %c0_i32_1 : i32 to index
    %c0_5 = arith.constant 0 : index
    %c0_6 = arith.constant 0 : index
    %6 = vector.load %arg2[%5, %c0_5, %c0_6] : memref<8x8x512xf32, #tpu.memory_space<vmem>>, vector<1x8x512xf32>
    %7 = vector.shape_cast %6 : vector<1x8x512xf32> to vector<8x512xf32>
    %c0_7 = arith.constant 0 : index
    %c0_8 = arith.constant 0 : index
    %8 = vector.load %arg3[%c0_7, %c0_8] : memref<128x512xf32, #tpu.memory_space<vmem>>, vector<128x512xf32>
    %cst = arith.constant dense<0.000000e+00> : vector<8x512xf32>
    %9 = tpu.matmul %3, %8, %cst {dimension_numbers = #tpu.dot_dimension_numbers<[1], [0], [0], [1], [0, 0, 1, 1], [], []>} : vector<8x128xf32>, vector<128x512xf32>, vector<8x512xf32> -> vector<8x512xf32>
    %10 = arith.addf %7, %9 : vector<8x512xf32>
    %11 = vector.extract_strided_slice %10 {offsets = [0, 0], sizes = [8, 128], strides = [1, 1]} : vector<8x512xf32> to vector<8x128xf32>
    %12 = arith.negf %11 : vector<8x128xf32>
    %13 = math.exp %12 : vector<8x128xf32>
    %cst_9 = arith.constant 1.000000e+00 : f32
    %14 = vector.broadcast %cst_9 : f32 to vector<8x128xf32>
    %15 = arith.addf %14, %13 : vector<8x128xf32>
    %16 = arith.divf %14, %15 : vector<8x128xf32>
    %17 = vector.extract_strided_slice %10 {offsets = [0, 128], sizes = [8, 128], strides = [1, 1]} : vector<8x512xf32> to vector<8x128xf32>
    %18 = arith.negf %17 : vector<8x128xf32>
    %19 = math.exp %18 : vector<8x128xf32>
    %cst_10 = arith.constant 1.000000e+00 : f32
    %20 = vector.broadcast %cst_10 : f32 to vector<8x128xf32>
    %21 = arith.addf %20, %19 : vector<8x128xf32>
    %22 = arith.divf %20, %21 : vector<8x128xf32>
    %23 = vector.extract_strided_slice %10 {offsets = [0, 256], sizes = [8, 128], strides = [1, 1]} : vector<8x512xf32> to vector<8x128xf32>
    %24 = math.tanh %23 : vector<8x128xf32>
    %25 = vector.extract_strided_slice %10 {offsets = [0, 384], sizes = [8, 128], strides = [1, 1]} : vector<8x512xf32> to vector<8x128xf32>
    %26 = arith.negf %25 : vector<8x128xf32>
    %27 = math.exp %26 : vector<8x128xf32>
    %cst_11 = arith.constant 1.000000e+00 : f32
    %28 = vector.broadcast %cst_11 : f32 to vector<8x128xf32>
    %29 = arith.addf %28, %27 : vector<8x128xf32>
    %30 = arith.divf %28, %29 : vector<8x128xf32>
    %31 = arith.mulf %22, %4 : vector<8x128xf32>
    %32 = arith.mulf %16, %24 : vector<8x128xf32>
    %33 = arith.addf %31, %32 : vector<8x128xf32>
    %34 = math.tanh %33 : vector<8x128xf32>
    %35 = arith.mulf %30, %34 : vector<8x128xf32>
    %c0_12 = arith.constant 0 : index
    %c0_13 = arith.constant 0 : index
    %36 = vector.load %arg5[%c0_12, %c0_13] : memref<8x128xf32, #tpu.memory_space<vmem>>, vector<8x128xf32>
    tpu.vector_store %arg5[%c0_12, %c0_13], %35 {strides = array<i32>} : memref<8x128xf32, #tpu.memory_space<vmem>>, vector<8x128xf32>,
    %c0_14 = arith.constant 0 : index
    %c0_15 = arith.constant 0 : index
    %37 = vector.load %arg6[%c0_14, %c0_15] : memref<8x128xf32, #tpu.memory_space<vmem>>, vector<8x128xf32>
    tpu.vector_store %arg6[%c0_14, %c0_15], %33 {strides = array<i32>} : memref<8x128xf32, #tpu.memory_space<vmem>>, vector<8x128xf32>,
    %38 = arith.index_cast %c0_i32_1 : i32 to index
    %c0_16 = arith.constant 0 : index
    %c0_17 = arith.constant 0 : index
    %39 = vector.load %arg4[%38, %c0_16, %c0_17] : memref<8x8x128xf32, #tpu.memory_space<vmem>>, vector<1x8x128xf32>
    %40 = vector.shape_cast %39 : vector<1x8x128xf32> to vector<8x128xf32>
    %41 = vector.shape_cast %35 : vector<8x128xf32> to vector<1x8x128xf32>
    tpu.vector_store %arg4[%38, %c0_16, %c0_17], %41 {strides = array<i32>} : memref<8x8x128xf32, #tpu.memory_space<vmem>>, vector<1x8x128xf32>,
    %c1_i32 = arith.constant 1 : i32
    %c0_18 = arith.constant 0 : index
    %c0_19 = arith.constant 0 : index
    %42 = vector.load %arg5[%c0_18, %c0_19] : memref<8x128xf32, #tpu.memory_space<vmem>>, vector<8x128xf32>
    %c0_20 = arith.constant 0 : index
    %c0_21 = arith.constant 0 : index
    %43 = vector.load %arg6[%c0_20, %c0_21] : memref<8x128xf32, #tpu.memory_space<vmem>>, vector<8x128xf32>
    %44 = arith.index_cast %c1_i32 : i32 to index
    %c0_22 = arith.constant 0 : index
    %c0_23 = arith.constant 0 : index
    %45 = vector.load %arg2[%44, %c0_22, %c0_23] : memref<8x8x512xf32, #tpu.memory_space<vmem>>, vector<1x8x512xf32>
    %46 = vector.shape_cast %45 : vector<1x8x512xf32> to vector<8x512xf32>
    %c0_24 = arith.constant 0 : index
    %c0_25 = arith.constant 0 : index
    %47 = vector.load %arg3[%c0_24, %c0_25] : memref<128x512xf32, #tpu.memory_space<vmem>>, vector<128x512xf32>
    %cst_26 = arith.constant dense<0.000000e+00> : vector<8x512xf32>
    %48 = tpu.matmul %42, %47, %cst_26 {dimension_numbers = #tpu.dot_dimension_numbers<[1], [0], [0], [1], [0, 0, 1, 1], [], []>} : vector<8x128xf32>, vector<128x512xf32>, vector<8x512xf32> -> vector<8x512xf32>
    %49 = arith.addf %46, %48 : vector<8x512xf32>
    %50 = vector.extract_strided_slice %49 {offsets = [0, 0], sizes = [8, 128], strides = [1, 1]} : vector<8x512xf32> to vector<8x128xf32>
    %51 = arith.negf %50 : vector<8x128xf32>
    %52 = math.exp %51 : vector<8x128xf32>
    %cst_27 = arith.constant 1.000000e+00 : f32
    %53 = vector.broadcast %cst_27 : f32 to vector<8x128xf32>
    %54 = arith.addf %53, %52 : vector<8x128xf32>
    %55 = arith.divf %53, %54 : vector<8x128xf32>
    %56 = vector.extract_strided_slice %49 {offsets = [0, 128], sizes = [8, 128], strides = [1, 1]} : vector<8x512xf32> to vector<8x128xf32>
    %57 = arith.negf %56 : vector<8x128xf32>
    %58 = math.exp %57 : vector<8x128xf32>
    %cst_28 = arith.constant 1.000000e+00 : f32
    %59 = vector.broadcast %cst_28 : f32 to vector<8x128xf32>
    %60 = arith.addf %59, %58 : vector<8x128xf32>
    %61 = arith.divf %59, %60 : vector<8x128xf32>
    %62 = vector.extract_strided_slice %49 {offsets = [0, 256], sizes = [8, 128], strides = [1, 1]} : vector<8x512xf32> to vector<8x128xf32>
    %63 = math.tanh %62 : vector<8x128xf32>
    %64 = vector.extract_strided_slice %49 {offsets = [0, 384], sizes = [8, 128], strides = [1, 1]} : vector<8x512xf32> to vector<8x128xf32>
    %65 = arith.negf %64 : vector<8x128xf32>
    %66 = math.exp %65 : vector<8x128xf32>
    %cst_29 = arith.constant 1.000000e+00 : f32
    %67 = vector.broadcast %cst_29 : f32 to vector<8x128xf32>
    %68 = arith.addf %67, %66 : vector<8x128xf32>
    %69 = arith.divf %67, %68 : vector<8x128xf32>
    %70 = arith.mulf %61, %43 : vector<8x128xf32>
    %71 = arith.mulf %55, %63 : vector<8x128xf32>
    %72 = arith.addf %70, %71 : vector<8x128xf32>
    %73 = math.tanh %72 : vector<8x128xf32>
    %74 = arith.mulf %69, %73 : vector<8x128xf32>
    %c0_30 = arith.constant 0 : index
    %c0_31 = arith.constant 0 : index
    %75 = vector.load %arg5[%c0_30, %c0_31] : memref<8x128xf32, #tpu.memory_space<vmem>>, vector<8x128xf32>
    tpu.vector_store %arg5[%c0_30, %c0_31], %74 {strides = array<i32>} : memref<8x128xf32, #tpu.memory_space<vmem>>, vector<8x128xf32>,
    %c0_32 = arith.constant 0 : index
    %c0_33 = arith.constant 0 : index
    %76 = vector.load %arg6[%c0_32, %c0_33] : memref<8x128xf32, #tpu.memory_space<vmem>>, vector<8x128xf32>
    tpu.vector_store %arg6[%c0_32, %c0_33], %72 {strides = array<i32>} : memref<8x128xf32, #tpu.memory_space<vmem>>, vector<8x128xf32>,
    %77 = arith.index_cast %c1_i32 : i32 to index
    %c0_34 = arith.constant 0 : index
    %c0_35 = arith.constant 0 : index
    %78 = vector.load %arg4[%77, %c0_34, %c0_35] : memref<8x8x128xf32, #tpu.memory_space<vmem>>, vector<1x8x128xf32>
    %79 = vector.shape_cast %78 : vector<1x8x128xf32> to vector<8x128xf32>
    %80 = vector.shape_cast %74 : vector<8x128xf32> to vector<1x8x128xf32>
    tpu.vector_store %arg4[%77, %c0_34, %c0_35], %80 {strides = array<i32>} : memref<8x8x128xf32, #tpu.memory_space<vmem>>, vector<1x8x128xf32>,
    %c2_i32 = arith.constant 2 : i32
    %c0_36 = arith.constant 0 : index
    %c0_37 = arith.constant 0 : index
    %81 = vector.load %arg5[%c0_36, %c0_37] : memref<8x128xf32, #tpu.memory_space<vmem>>, vector<8x128xf32>
    %c0_38 = arith.constant 0 : index
    %c0_39 = arith.constant 0 : index
    %82 = vector.load %arg6[%c0_38, %c0_39] : memref<8x128xf32, #tpu.memory_space<vmem>>, vector<8x128xf32>
    %83 = arith.index_cast %c2_i32 : i32 to index
    %c0_40 = arith.constant 0 : index
    %c0_41 = arith.constant 0 : index
    %84 = vector.load %arg2[%83, %c0_40, %c0_41] : memref<8x8x512xf32, #tpu.memory_space<vmem>>, vector<1x8x512xf32>
    %85 = vector.shape_cast %84 : vector<1x8x512xf32> to vector<8x512xf32>
    %c0_42 = arith.constant 0 : index
    %c0_43 = arith.constant 0 : index
    %86 = vector.load %arg3[%c0_42, %c0_43] : memref<128x512xf32, #tpu.memory_space<vmem>>, vector<128x512xf32>
    %cst_44 = arith.constant dense<0.000000e+00> : vector<8x512xf32>
    %87 = tpu.matmul %81, %86, %cst_44 {dimension_numbers = #tpu.dot_dimension_numbers<[1], [0], [0], [1], [0, 0, 1, 1], [], []>} : vector<8x128xf32>, vector<128x512xf32>, vector<8x512xf32> -> vector<8x512xf32>
    %88 = arith.addf %85, %87 : vector<8x512xf32>
    %89 = vector.extract_strided_slice %88 {offsets = [0, 0], sizes = [8, 128], strides = [1, 1]} : vector<8x512xf32> to vector<8x128xf32>
    %90 = arith.negf %89 : vector<8x128xf32>
    %91 = math.exp %90 : vector<8x128xf32>
    %cst_45 = arith.constant 1.000000e+00 : f32
    %92 = vector.broadcast %cst_45 : f32 to vector<8x128xf32>
    %93 = arith.addf %92, %91 : vector<8x128xf32>
    %94 = arith.divf %92, %93 : vector<8x128xf32>
    %95 = vector.extract_strided_slice %88 {offsets = [0, 128], sizes = [8, 128], strides = [1, 1]} : vector<8x512xf32> to vector<8x128xf32>
    %96 = arith.negf %95 : vector<8x128xf32>
    %97 = math.exp %96 : vector<8x128xf32>
    %cst_46 = arith.constant 1.000000e+00 : f32
    %98 = vector.broadcast %cst_46 : f32 to vector<8x128xf32>
    %99 = arith.addf %98, %97 : vector<8x128xf32>
    %100 = arith.divf %98, %99 : vector<8x128xf32>
    %101 = vector.extract_strided_slice %88 {offsets = [0, 256], sizes = [8, 128], strides = [1, 1]} : vector<8x512xf32> to vector<8x128xf32>
    %102 = math.tanh %101 : vector<8x128xf32>
    %103 = vector.extract_strided_slice %88 {offsets = [0, 384], sizes = [8, 128], strides = [1, 1]} : vector<8x512xf32> to vector<8x128xf32>
    %104 = arith.negf %103 : vector<8x128xf32>
    %105 = math.exp %104 : vector<8x128xf32>
    %cst_47 = arith.constant 1.000000e+00 : f32
    %106 = vector.broadcast %cst_47 : f32 to vector<8x128xf32>
    %107 = arith.addf %106, %105 : vector<8x128xf32>
    %108 = arith.divf %106, %107 : vector<8x128xf32>
    %109 = arith.mulf %100, %82 : vector<8x128xf32>
    %110 = arith.mulf %94, %102 : vector<8x128xf32>
    %111 = arith.addf %109, %110 : vector<8x128xf32>
    %112 = math.tanh %111 : vector<8x128xf32>
    %113 = arith.mulf %108, %112 : vector<8x128xf32>
    %c0_48 = arith.constant 0 : index
    %c0_49 = arith.constant 0 : index
    %114 = vector.load %arg5[%c0_48, %c0_49] : memref<8x128xf32, #tpu.memory_space<vmem>>, vector<8x128xf32>
    tpu.vector_store %arg5[%c0_48, %c0_49], %113 {strides = array<i32>} : memref<8x128xf32, #tpu.memory_space<vmem>>, vector<8x128xf32>,
    %c0_50 = arith.constant 0 : index
    %c0_51 = arith.constant 0 : index
    %115 = vector.load %arg6[%c0_50, %c0_51] : memref<8x128xf32, #tpu.memory_space<vmem>>, vector<8x128xf32>
    tpu.vector_store %arg6[%c0_50, %c0_51], %111 {strides = array<i32>} : memref<8x128xf32, #tpu.memory_space<vmem>>, vector<8x128xf32>,
    %116 = arith.index_cast %c2_i32 : i32 to index
    %c0_52 = arith.constant 0 : index
    %c0_53 = arith.constant 0 : index
    %117 = vector.load %arg4[%116, %c0_52, %c0_53] : memref<8x8x128xf32, #tpu.memory_space<vmem>>, vector<1x8x128xf32>
    %118 = vector.shape_cast %117 : vector<1x8x128xf32> to vector<8x128xf32>
    %119 = vector.shape_cast %113 : vector<8x128xf32> to vector<1x8x128xf32>
    tpu.vector_store %arg4[%116, %c0_52, %c0_53], %119 {strides = array<i32>} : memref<8x8x128xf32, #tpu.memory_space<vmem>>, vector<1x8x128xf32>,
    %c3_i32 = arith.constant 3 : i32
    %c0_54 = arith.constant 0 : index
    %c0_55 = arith.constant 0 : index
    %120 = vector.load %arg5[%c0_54, %c0_55] : memref<8x128xf32, #tpu.memory_space<vmem>>, vector<8x128xf32>
    %c0_56 = arith.constant 0 : index
    %c0_57 = arith.constant 0 : index
    %121 = vector.load %arg6[%c0_56, %c0_57] : memref<8x128xf32, #tpu.memory_space<vmem>>, vector<8x128xf32>
    %122 = arith.index_cast %c3_i32 : i32 to index
    %c0_58 = arith.constant 0 : index
    %c0_59 = arith.constant 0 : index
    %123 = vector.load %arg2[%122, %c0_58, %c0_59] : memref<8x8x512xf32, #tpu.memory_space<vmem>>, vector<1x8x512xf32>
    %124 = vector.shape_cast %123 : vector<1x8x512xf32> to vector<8x512xf32>
    %c0_60 = arith.constant 0 : index
    %c0_61 = arith.constant 0 : index
    %125 = vector.load %arg3[%c0_60, %c0_61] : memref<128x512xf32, #tpu.memory_space<vmem>>, vector<128x512xf32>
    %cst_62 = arith.constant dense<0.000000e+00> : vector<8x512xf32>
    %126 = tpu.matmul %120, %125, %cst_62 {dimension_numbers = #tpu.dot_dimension_numbers<[1], [0], [0], [1], [0, 0, 1, 1], [], []>} : vector<8x128xf32>, vector<128x512xf32>, vector<8x512xf32> -> vector<8x512xf32>
    %127 = arith.addf %124, %126 : vector<8x512xf32>
    %128 = vector.extract_strided_slice %127 {offsets = [0, 0], sizes = [8, 128], strides = [1, 1]} : vector<8x512xf32> to vector<8x128xf32>
    %129 = arith.negf %128 : vector<8x128xf32>
    %130 = math.exp %129 : vector<8x128xf32>
    %cst_63 = arith.constant 1.000000e+00 : f32
    %131 = vector.broadcast %cst_63 : f32 to vector<8x128xf32>
    %132 = arith.addf %131, %130 : vector<8x128xf32>
    %133 = arith.divf %131, %132 : vector<8x128xf32>
    %134 = vector.extract_strided_slice %127 {offsets = [0, 128], sizes = [8, 128], strides = [1, 1]} : vector<8x512xf32> to vector<8x128xf32>
    %135 = arith.negf %134 : vector<8x128xf32>
    %136 = math.exp %135 : vector<8x128xf32>
    %cst_64 = arith.constant 1.000000e+00 : f32
    %137 = vector.broadcast %cst_64 : f32 to vector<8x128xf32>
    %138 = arith.addf %137, %136 : vector<8x128xf32>
    %139 = arith.divf %137, %138 : vector<8x128xf32>
    %140 = vector.extract_strided_slice %127 {offsets = [0, 256], sizes = [8, 128], strides = [1, 1]} : vector<8x512xf32> to vector<8x128xf32>
    %141 = math.tanh %140 : vector<8x128xf32>
    %142 = vector.extract_strided_slice %127 {offsets = [0, 384], sizes = [8, 128], strides = [1, 1]} : vector<8x512xf32> to vector<8x128xf32>
    %143 = arith.negf %142 : vector<8x128xf32>
    %144 = math.exp %143 : vector<8x128xf32>
    %cst_65 = arith.constant 1.000000e+00 : f32
    %145 = vector.broadcast %cst_65 : f32 to vector<8x128xf32>
    %146 = arith.addf %145, %144 : vector<8x128xf32>
    %147 = arith.divf %145, %146 : vector<8x128xf32>
    %148 = arith.mulf %139, %121 : vector<8x128xf32>
    %149 = arith.mulf %133, %141 : vector<8x128xf32>
    %150 = arith.addf %148, %149 : vector<8x128xf32>
    %151 = math.tanh %150 : vector<8x128xf32>
    %152 = arith.mulf %147, %151 : vector<8x128xf32>
    %c0_66 = arith.constant 0 : index
    %c0_67 = arith.constant 0 : index
    %153 = vector.load %arg5[%c0_66, %c0_67] : memref<8x128xf32, #tpu.memory_space<vmem>>, vector<8x128xf32>
    tpu.vector_store %arg5[%c0_66, %c0_67], %152 {strides = array<i32>} : memref<8x128xf32, #tpu.memory_space<vmem>>, vector<8x128xf32>,
    %c0_68 = arith.constant 0 : index
    %c0_69 = arith.constant 0 : index
    %154 = vector.load %arg6[%c0_68, %c0_69] : memref<8x128xf32, #tpu.memory_space<vmem>>, vector<8x128xf32>
    tpu.vector_store %arg6[%c0_68, %c0_69], %150 {strides = array<i32>} : memref<8x128xf32, #tpu.memory_space<vmem>>, vector<8x128xf32>,
    %155 = arith.index_cast %c3_i32 : i32 to index
    %c0_70 = arith.constant 0 : index
    %c0_71 = arith.constant 0 : index
    %156 = vector.load %arg4[%155, %c0_70, %c0_71] : memref<8x8x128xf32, #tpu.memory_space<vmem>>, vector<1x8x128xf32>
    %157 = vector.shape_cast %156 : vector<1x8x128xf32> to vector<8x128xf32>
    %158 = vector.shape_cast %152 : vector<8x128xf32> to vector<1x8x128xf32>
    tpu.vector_store %arg4[%155, %c0_70, %c0_71], %158 {strides = array<i32>} : memref<8x8x128xf32, #tpu.memory_space<vmem>>, vector<1x8x128xf32>,
    %c4_i32 = arith.constant 4 : i32
    %c0_72 = arith.constant 0 : index
    %c0_73 = arith.constant 0 : index
    %159 = vector.load %arg5[%c0_72, %c0_73] : memref<8x128xf32, #tpu.memory_space<vmem>>, vector<8x128xf32>
    %c0_74 = arith.constant 0 : index
    %c0_75 = arith.constant 0 : index
    %160 = vector.load %arg6[%c0_74, %c0_75] : memref<8x128xf32, #tpu.memory_space<vmem>>, vector<8x128xf32>
    %161 = arith.index_cast %c4_i32 : i32 to index
    %c0_76 = arith.constant 0 : index
    %c0_77 = arith.constant 0 : index
    %162 = vector.load %arg2[%161, %c0_76, %c0_77] : memref<8x8x512xf32, #tpu.memory_space<vmem>>, vector<1x8x512xf32>
    %163 = vector.shape_cast %162 : vector<1x8x512xf32> to vector<8x512xf32>
    %c0_78 = arith.constant 0 : index
    %c0_79 = arith.constant 0 : index
    %164 = vector.load %arg3[%c0_78, %c0_79] : memref<128x512xf32, #tpu.memory_space<vmem>>, vector<128x512xf32>
    %cst_80 = arith.constant dense<0.000000e+00> : vector<8x512xf32>
    %165 = tpu.matmul %159, %164, %cst_80 {dimension_numbers = #tpu.dot_dimension_numbers<[1], [0], [0], [1], [0, 0, 1, 1], [], []>} : vector<8x128xf32>, vector<128x512xf32>, vector<8x512xf32> -> vector<8x512xf32>
    %166 = arith.addf %163, %165 : vector<8x512xf32>
    %167 = vector.extract_strided_slice %166 {offsets = [0, 0], sizes = [8, 128], strides = [1, 1]} : vector<8x512xf32> to vector<8x128xf32>
    %168 = arith.negf %167 : vector<8x128xf32>
    %169 = math.exp %168 : vector<8x128xf32>
    %cst_81 = arith.constant 1.000000e+00 : f32
    %170 = vector.broadcast %cst_81 : f32 to vector<8x128xf32>
    %171 = arith.addf %170, %169 : vector<8x128xf32>
    %172 = arith.divf %170, %171 : vector<8x128xf32>
    %173 = vector.extract_strided_slice %166 {offsets = [0, 128], sizes = [8, 128], strides = [1, 1]} : vector<8x512xf32> to vector<8x128xf32>
    %174 = arith.negf %173 : vector<8x128xf32>
    %175 = math.exp %174 : vector<8x128xf32>
    %cst_82 = arith.constant 1.000000e+00 : f32
    %176 = vector.broadcast %cst_82 : f32 to vector<8x128xf32>
    %177 = arith.addf %176, %175 : vector<8x128xf32>
    %178 = arith.divf %176, %177 : vector<8x128xf32>
    %179 = vector.extract_strided_slice %166 {offsets = [0, 256], sizes = [8, 128], strides = [1, 1]} : vector<8x512xf32> to vector<8x128xf32>
    %180 = math.tanh %179 : vector<8x128xf32>
    %181 = vector.extract_strided_slice %166 {offsets = [0, 384], sizes = [8, 128], strides = [1, 1]} : vector<8x512xf32> to vector<8x128xf32>
    %182 = arith.negf %181 : vector<8x128xf32>
    %183 = math.exp %182 : vector<8x128xf32>
    %cst_83 = arith.constant 1.000000e+00 : f32
    %184 = vector.broadcast %cst_83 : f32 to vector<8x128xf32>
    %185 = arith.addf %184, %183 : vector<8x128xf32>
    %186 = arith.divf %184, %185 : vector<8x128xf32>
    %187 = arith.mulf %178, %160 : vector<8x128xf32>
    %188 = arith.mulf %172, %180 : vector<8x128xf32>
    %189 = arith.addf %187, %188 : vector<8x128xf32>
    %190 = math.tanh %189 : vector<8x128xf32>
    %191 = arith.mulf %186, %190 : vector<8x128xf32>
    %c0_84 = arith.constant 0 : index
    %c0_85 = arith.constant 0 : index
    %192 = vector.load %arg5[%c0_84, %c0_85] : memref<8x128xf32, #tpu.memory_space<vmem>>, vector<8x128xf32>
    tpu.vector_store %arg5[%c0_84, %c0_85], %191 {strides = array<i32>} : memref<8x128xf32, #tpu.memory_space<vmem>>, vector<8x128xf32>,
    %c0_86 = arith.constant 0 : index
    %c0_87 = arith.constant 0 : index
    %193 = vector.load %arg6[%c0_86, %c0_87] : memref<8x128xf32, #tpu.memory_space<vmem>>, vector<8x128xf32>
    tpu.vector_store %arg6[%c0_86, %c0_87], %189 {strides = array<i32>} : memref<8x128xf32, #tpu.memory_space<vmem>>, vector<8x128xf32>,
    %194 = arith.index_cast %c4_i32 : i32 to index
    %c0_88 = arith.constant 0 : index
    %c0_89 = arith.constant 0 : index
    %195 = vector.load %arg4[%194, %c0_88, %c0_89] : memref<8x8x128xf32, #tpu.memory_space<vmem>>, vector<1x8x128xf32>
    %196 = vector.shape_cast %195 : vector<1x8x128xf32> to vector<8x128xf32>
    %197 = vector.shape_cast %191 : vector<8x128xf32> to vector<1x8x128xf32>
    tpu.vector_store %arg4[%194, %c0_88, %c0_89], %197 {strides = array<i32>} : memref<8x8x128xf32, #tpu.memory_space<vmem>>, vector<1x8x128xf32>,
    %c5_i32 = arith.constant 5 : i32
    %c0_90 = arith.constant 0 : index
    %c0_91 = arith.constant 0 : index
    %198 = vector.load %arg5[%c0_90, %c0_91] : memref<8x128xf32, #tpu.memory_space<vmem>>, vector<8x128xf32>
    %c0_92 = arith.constant 0 : index
    %c0_93 = arith.constant 0 : index
    %199 = vector.load %arg6[%c0_92, %c0_93] : memref<8x128xf32, #tpu.memory_space<vmem>>, vector<8x128xf32>
    %200 = arith.index_cast %c5_i32 : i32 to index
    %c0_94 = arith.constant 0 : index
    %c0_95 = arith.constant 0 : index
    %201 = vector.load %arg2[%200, %c0_94, %c0_95] : memref<8x8x512xf32, #tpu.memory_space<vmem>>, vector<1x8x512xf32>
    %202 = vector.shape_cast %201 : vector<1x8x512xf32> to vector<8x512xf32>
    %c0_96 = arith.constant 0 : index
    %c0_97 = arith.constant 0 : index
    %203 = vector.load %arg3[%c0_96, %c0_97] : memref<128x512xf32, #tpu.memory_space<vmem>>, vector<128x512xf32>
    %cst_98 = arith.constant dense<0.000000e+00> : vector<8x512xf32>
    %204 = tpu.matmul %198, %203, %cst_98 {dimension_numbers = #tpu.dot_dimension_numbers<[1], [0], [0], [1], [0, 0, 1, 1], [], []>} : vector<8x128xf32>, vector<128x512xf32>, vector<8x512xf32> -> vector<8x512xf32>
    %205 = arith.addf %202, %204 : vector<8x512xf32>
    %206 = vector.extract_strided_slice %205 {offsets = [0, 0], sizes = [8, 128], strides = [1, 1]} : vector<8x512xf32> to vector<8x128xf32>
    %207 = arith.negf %206 : vector<8x128xf32>
    %208 = math.exp %207 : vector<8x128xf32>
    %cst_99 = arith.constant 1.000000e+00 : f32
    %209 = vector.broadcast %cst_99 : f32 to vector<8x128xf32>
    %210 = arith.addf %209, %208 : vector<8x128xf32>
    %211 = arith.divf %209, %210 : vector<8x128xf32>
    %212 = vector.extract_strided_slice %205 {offsets = [0, 128], sizes = [8, 128], strides = [1, 1]} : vector<8x512xf32> to vector<8x128xf32>
    %213 = arith.negf %212 : vector<8x128xf32>
    %214 = math.exp %213 : vector<8x128xf32>
    %cst_100 = arith.constant 1.000000e+00 : f32
    %215 = vector.broadcast %cst_100 : f32 to vector<8x128xf32>
    %216 = arith.addf %215, %214 : vector<8x128xf32>
    %217 = arith.divf %215, %216 : vector<8x128xf32>
    %218 = vector.extract_strided_slice %205 {offsets = [0, 256], sizes = [8, 128], strides = [1, 1]} : vector<8x512xf32> to vector<8x128xf32>
    %219 = math.tanh %218 : vector<8x128xf32>
    %220 = vector.extract_strided_slice %205 {offsets = [0, 384], sizes = [8, 128], strides = [1, 1]} : vector<8x512xf32> to vector<8x128xf32>
    %221 = arith.negf %220 : vector<8x128xf32>
    %222 = math.exp %221 : vector<8x128xf32>
    %cst_101 = arith.constant 1.000000e+00 : f32
    %223 = vector.broadcast %cst_101 : f32 to vector<8x128xf32>
    %224 = arith.addf %223, %222 : vector<8x128xf32>
    %225 = arith.divf %223, %224 : vector<8x128xf32>
    %226 = arith.mulf %217, %199 : vector<8x128xf32>
    %227 = arith.mulf %211, %219 : vector<8x128xf32>
    %228 = arith.addf %226, %227 : vector<8x128xf32>
    %229 = math.tanh %228 : vector<8x128xf32>
    %230 = arith.mulf %225, %229 : vector<8x128xf32>
    %c0_102 = arith.constant 0 : index
    %c0_103 = arith.constant 0 : index
    %231 = vector.load %arg5[%c0_102, %c0_103] : memref<8x128xf32, #tpu.memory_space<vmem>>, vector<8x128xf32>
    tpu.vector_store %arg5[%c0_102, %c0_103], %230 {strides = array<i32>} : memref<8x128xf32, #tpu.memory_space<vmem>>, vector<8x128xf32>,
    %c0_104 = arith.constant 0 : index
    %c0_105 = arith.constant 0 : index
    %232 = vector.load %arg6[%c0_104, %c0_105] : memref<8x128xf32, #tpu.memory_space<vmem>>, vector<8x128xf32>
    tpu.vector_store %arg6[%c0_104, %c0_105], %228 {strides = array<i32>} : memref<8x128xf32, #tpu.memory_space<vmem>>, vector<8x128xf32>,
    %233 = arith.index_cast %c5_i32 : i32 to index
    %c0_106 = arith.constant 0 : index
    %c0_107 = arith.constant 0 : index
    %234 = vector.load %arg4[%233, %c0_106, %c0_107] : memref<8x8x128xf32, #tpu.memory_space<vmem>>, vector<1x8x128xf32>
    %235 = vector.shape_cast %234 : vector<1x8x128xf32> to vector<8x128xf32>
    %236 = vector.shape_cast %230 : vector<8x128xf32> to vector<1x8x128xf32>
    tpu.vector_store %arg4[%233, %c0_106, %c0_107], %236 {strides = array<i32>} : memref<8x8x128xf32, #tpu.memory_space<vmem>>, vector<1x8x128xf32>,
    %c6_i32 = arith.constant 6 : i32
    %c0_108 = arith.constant 0 : index
    %c0_109 = arith.constant 0 : index
    %237 = vector.load %arg5[%c0_108, %c0_109] : memref<8x128xf32, #tpu.memory_space<vmem>>, vector<8x128xf32>
    %c0_110 = arith.constant 0 : index
    %c0_111 = arith.constant 0 : index
    %238 = vector.load %arg6[%c0_110, %c0_111] : memref<8x128xf32, #tpu.memory_space<vmem>>, vector<8x128xf32>
    %239 = arith.index_cast %c6_i32 : i32 to index
    %c0_112 = arith.constant 0 : index
    %c0_113 = arith.constant 0 : index
    %240 = vector.load %arg2[%239, %c0_112, %c0_113] : memref<8x8x512xf32, #tpu.memory_space<vmem>>, vector<1x8x512xf32>
    %241 = vector.shape_cast %240 : vector<1x8x512xf32> to vector<8x512xf32>
    %c0_114 = arith.constant 0 : index
    %c0_115 = arith.constant 0 : index
    %242 = vector.load %arg3[%c0_114, %c0_115] : memref<128x512xf32, #tpu.memory_space<vmem>>, vector<128x512xf32>
    %cst_116 = arith.constant dense<0.000000e+00> : vector<8x512xf32>
    %243 = tpu.matmul %237, %242, %cst_116 {dimension_numbers = #tpu.dot_dimension_numbers<[1], [0], [0], [1], [0, 0, 1, 1], [], []>} : vector<8x128xf32>, vector<128x512xf32>, vector<8x512xf32> -> vector<8x512xf32>
    %244 = arith.addf %241, %243 : vector<8x512xf32>
    %245 = vector.extract_strided_slice %244 {offsets = [0, 0], sizes = [8, 128], strides = [1, 1]} : vector<8x512xf32> to vector<8x128xf32>
    %246 = arith.negf %245 : vector<8x128xf32>
    %247 = math.exp %246 : vector<8x128xf32>
    %cst_117 = arith.constant 1.000000e+00 : f32
    %248 = vector.broadcast %cst_117 : f32 to vector<8x128xf32>
    %249 = arith.addf %248, %247 : vector<8x128xf32>
    %250 = arith.divf %248, %249 : vector<8x128xf32>
    %251 = vector.extract_strided_slice %244 {offsets = [0, 128], sizes = [8, 128], strides = [1, 1]} : vector<8x512xf32> to vector<8x128xf32>
    %252 = arith.negf %251 : vector<8x128xf32>
    %253 = math.exp %252 : vector<8x128xf32>
    %cst_118 = arith.constant 1.000000e+00 : f32
    %254 = vector.broadcast %cst_118 : f32 to vector<8x128xf32>
    %255 = arith.addf %254, %253 : vector<8x128xf32>
    %256 = arith.divf %254, %255 : vector<8x128xf32>
    %257 = vector.extract_strided_slice %244 {offsets = [0, 256], sizes = [8, 128], strides = [1, 1]} : vector<8x512xf32> to vector<8x128xf32>
    %258 = math.tanh %257 : vector<8x128xf32>
    %259 = vector.extract_strided_slice %244 {offsets = [0, 384], sizes = [8, 128], strides = [1, 1]} : vector<8x512xf32> to vector<8x128xf32>
    %260 = arith.negf %259 : vector<8x128xf32>
    %261 = math.exp %260 : vector<8x128xf32>
    %cst_119 = arith.constant 1.000000e+00 : f32
    %262 = vector.broadcast %cst_119 : f32 to vector<8x128xf32>
    %263 = arith.addf %262, %261 : vector<8x128xf32>
    %264 = arith.divf %262, %263 : vector<8x128xf32>
    %265 = arith.mulf %256, %238 : vector<8x128xf32>
    %266 = arith.mulf %250, %258 : vector<8x128xf32>
    %267 = arith.addf %265, %266 : vector<8x128xf32>
    %268 = math.tanh %267 : vector<8x128xf32>
    %269 = arith.mulf %264, %268 : vector<8x128xf32>
    %c0_120 = arith.constant 0 : index
    %c0_121 = arith.constant 0 : index
    %270 = vector.load %arg5[%c0_120, %c0_121] : memref<8x128xf32, #tpu.memory_space<vmem>>, vector<8x128xf32>
    tpu.vector_store %arg5[%c0_120, %c0_121], %269 {strides = array<i32>} : memref<8x128xf32, #tpu.memory_space<vmem>>, vector<8x128xf32>,
    %c0_122 = arith.constant 0 : index
    %c0_123 = arith.constant 0 : index
    %271 = vector.load %arg6[%c0_122, %c0_123] : memref<8x128xf32, #tpu.memory_space<vmem>>, vector<8x128xf32>
    tpu.vector_store %arg6[%c0_122, %c0_123], %267 {strides = array<i32>} : memref<8x128xf32, #tpu.memory_space<vmem>>, vector<8x128xf32>,
    %272 = arith.index_cast %c6_i32 : i32 to index
    %c0_124 = arith.constant 0 : index
    %c0_125 = arith.constant 0 : index
    %273 = vector.load %arg4[%272, %c0_124, %c0_125] : memref<8x8x128xf32, #tpu.memory_space<vmem>>, vector<1x8x128xf32>
    %274 = vector.shape_cast %273 : vector<1x8x128xf32> to vector<8x128xf32>
    %275 = vector.shape_cast %269 : vector<8x128xf32> to vector<1x8x128xf32>
    tpu.vector_store %arg4[%272, %c0_124, %c0_125], %275 {strides = array<i32>} : memref<8x8x128xf32, #tpu.memory_space<vmem>>, vector<1x8x128xf32>,
    %c7_i32 = arith.constant 7 : i32
    %c0_126 = arith.constant 0 : index
    %c0_127 = arith.constant 0 : index
    %276 = vector.load %arg5[%c0_126, %c0_127] : memref<8x128xf32, #tpu.memory_space<vmem>>, vector<8x128xf32>
    %c0_128 = arith.constant 0 : index
    %c0_129 = arith.constant 0 : index
    %277 = vector.load %arg6[%c0_128, %c0_129] : memref<8x128xf32, #tpu.memory_space<vmem>>, vector<8x128xf32>
    %278 = arith.index_cast %c7_i32 : i32 to index
    %c0_130 = arith.constant 0 : index
    %c0_131 = arith.constant 0 : index
    %279 = vector.load %arg2[%278, %c0_130, %c0_131] : memref<8x8x512xf32, #tpu.memory_space<vmem>>, vector<1x8x512xf32>
    %280 = vector.shape_cast %279 : vector<1x8x512xf32> to vector<8x512xf32>
    %c0_132 = arith.constant 0 : index
    %c0_133 = arith.constant 0 : index
    %281 = vector.load %arg3[%c0_132, %c0_133] : memref<128x512xf32, #tpu.memory_space<vmem>>, vector<128x512xf32>
    %cst_134 = arith.constant dense<0.000000e+00> : vector<8x512xf32>
    %282 = tpu.matmul %276, %281, %cst_134 {dimension_numbers = #tpu.dot_dimension_numbers<[1], [0], [0], [1], [0, 0, 1, 1], [], []>} : vector<8x128xf32>, vector<128x512xf32>, vector<8x512xf32> -> vector<8x512xf32>
    %283 = arith.addf %280, %282 : vector<8x512xf32>
    %284 = vector.extract_strided_slice %283 {offsets = [0, 0], sizes = [8, 128], strides = [1, 1]} : vector<8x512xf32> to vector<8x128xf32>
    %285 = arith.negf %284 : vector<8x128xf32>
    %286 = math.exp %285 : vector<8x128xf32>
    %cst_135 = arith.constant 1.000000e+00 : f32
    %287 = vector.broadcast %cst_135 : f32 to vector<8x128xf32>
    %288 = arith.addf %287, %286 : vector<8x128xf32>
    %289 = arith.divf %287, %288 : vector<8x128xf32>
    %290 = vector.extract_strided_slice %283 {offsets = [0, 128], sizes = [8, 128], strides = [1, 1]} : vector<8x512xf32> to vector<8x128xf32>
    %291 = arith.negf %290 : vector<8x128xf32>
    %292 = math.exp %291 : vector<8x128xf32>
    %cst_136 = arith.constant 1.000000e+00 : f32
    %293 = vector.broadcast %cst_136 : f32 to vector<8x128xf32>
    %294 = arith.addf %293, %292 : vector<8x128xf32>
    %295 = arith.divf %293, %294 : vector<8x128xf32>
    %296 = vector.extract_strided_slice %283 {offsets = [0, 256], sizes = [8, 128], strides = [1, 1]} : vector<8x512xf32> to vector<8x128xf32>
    %297 = math.tanh %296 : vector<8x128xf32>
    %298 = vector.extract_strided_slice %283 {offsets = [0, 384], sizes = [8, 128], strides = [1, 1]} : vector<8x512xf32> to vector<8x128xf32>
    %299 = arith.negf %298 : vector<8x128xf32>
    %300 = math.exp %299 : vector<8x128xf32>
    %cst_137 = arith.constant 1.000000e+00 : f32
    %301 = vector.broadcast %cst_137 : f32 to vector<8x128xf32>
    %302 = arith.addf %301, %300 : vector<8x128xf32>
    %303 = arith.divf %301, %302 : vector<8x128xf32>
    %304 = arith.mulf %295, %277 : vector<8x128xf32>
    %305 = arith.mulf %289, %297 : vector<8x128xf32>
    %306 = arith.addf %304, %305 : vector<8x128xf32>
    %307 = math.tanh %306 : vector<8x128xf32>
    %308 = arith.mulf %303, %307 : vector<8x128xf32>
    %c0_138 = arith.constant 0 : index
    %c0_139 = arith.constant 0 : index
    %309 = vector.load %arg5[%c0_138, %c0_139] : memref<8x128xf32, #tpu.memory_space<vmem>>, vector<8x128xf32>
    tpu.vector_store %arg5[%c0_138, %c0_139], %308 {strides = array<i32>} : memref<8x128xf32, #tpu.memory_space<vmem>>, vector<8x128xf32>,
    %c0_140 = arith.constant 0 : index
    %c0_141 = arith.constant 0 : index
    %310 = vector.load %arg6[%c0_140, %c0_141] : memref<8x128xf32, #tpu.memory_space<vmem>>, vector<8x128xf32>
    tpu.vector_store %arg6[%c0_140, %c0_141], %306 {strides = array<i32>} : memref<8x128xf32, #tpu.memory_space<vmem>>, vector<8x128xf32>,
    %311 = arith.index_cast %c7_i32 : i32 to index
    %c0_142 = arith.constant 0 : index
    %c0_143 = arith.constant 0 : index
    %312 = vector.load %arg4[%311, %c0_142, %c0_143] : memref<8x8x128xf32, #tpu.memory_space<vmem>>, vector<1x8x128xf32>
    %313 = vector.shape_cast %312 : vector<1x8x128xf32> to vector<8x128xf32>
    %314 = vector.shape_cast %308 : vector<8x128xf32> to vector<1x8x128xf32>
    tpu.vector_store %arg4[%311, %c0_142, %c0_143], %314 {strides = array<i32>} : memref<8x8x128xf32, #tpu.memory_space<vmem>>, vector<1x8x128xf32>,
    %c8_i32 = arith.constant 8 : i32
    return
  }
  func.func @transform_0(%arg0: i32, %arg1: i32) -> (i32, i32, i32) {
    %c0_i32 = arith.constant 0 : i32
    %c0_i32_0 = arith.constant 0 : i32
    return %arg1, %arg0, %c0_i32 : i32, i32, i32
  }
  func.func @transform_1(%arg0: i32, %arg1: i32) -> (i32, i32) {
    %c0_i32 = arith.constant 0 : i32
    %c0_i32_0 = arith.constant 0 : i32
    %c0_i32_1 = arith.constant 0 : i32
    return %c0_i32, %c0_i32_0 : i32, i32
  }
  func.func @transform_2(%arg0: i32, %arg1: i32) -> (i32, i32, i32) {
    %c0_i32 = arith.constant 0 : i32
    %c0_i32_0 = arith.constant 0 : i32
    return %arg1, %arg0, %c0_i32 : i32, i32, i32
  }
}

</mosaic_0001>

<llo_original>
// kernel: encoder_rnn_forward.2
$region0: #{encoder_rnn_forward.2}
  #allocation0 [shape = 'u32[]', space=smem, size = 0x4, offset = 0x4, fixed_abs, tag = 'smem constant byte address 0x4 - core index']
  #allocation1 [shape = 'u32[144,128]{1,0:T(1,128)}', space=vmem, size = 0x12000, scoped, tag = 'internal scratch']
  #allocation2 [shape = 'f32[8,128]{1,0:T(8,128)}', space=vmem, size = 0x1000, scoped, tag = 'scratch operand']
  #allocation3 [shape = 'f32[8,128]{1,0:T(8,128)}', space=vmem, size = 0x1000, scoped, tag = 'scratch operand']
  %s0 = inlined_call_operand.hbm [shape: f32[8,8,512], index: 0, kind: input, shape index: {}]
  %s1 = inlined_call_operand.hbm [shape: f32[128,512], index: 1, kind: input, shape index: {}]
  %s2 = inlined_call_operand.hbm [shape: f32[8,8,128], index: 2, kind: output, shape index: {}]
  %s3 = sld [smem:[#allocation0]]
  $region30: #{encoder_rnn_forward.2} parent=0
    _
  %s5 = ssub.s32 1, %s3
  %s6 = scalar_select 0, %s5, %s3
  $region1: #{encoder_rnn_forward.2} parent=0
    #allocation4 [shape = 'u8[131072]{0}', space=vmem, size = 0x20000, scoped, tag = 'input window, operand 0, single buffered']
    #allocation5 [shape = 's32[1]{0}', space=sflag, size = 0x4, scoped, tag = 'scoped memory for encoder_rnn_forward.2']
    #allocation6 [shape = 's32[1]{0}', space=sflag, size = 0x4, scoped, tag = 'scoped memory for encoder_rnn_forward.2']
    #allocation7 [shape = 'u8[262144]{0}', space=vmem, size = 0x40000, scoped, tag = 'input window, operand 1, single buffered']
    #allocation8 [shape = 's32[1]{0}', space=sflag, size = 0x4, scoped, tag = 'scoped memory for encoder_rnn_forward.2']
    #allocation9 [shape = 'u8[32768]{0}', space=vmem, size = 0x8000, scoped, tag = 'output window, operand 0, single buffered']
    %7 = vsyncpa [#allocation5], 0
    %8 = vsyncpa [#allocation8], 0
    %9 = vsyncpa [#allocation6], 0
    // Predicated region
    $region2: #{encoder_rnn_forward.2} parent=1 // pred_check
      _
    $region3: #{encoder_rnn_forward.2} parent=1 // pred_check_branch
      %11 = sbr.rel (0) target = $region5
    $region4: #{encoder_rnn_forward.2} parent=1 // pred_region
      %s13 = ssub.s32 4096, 4096
      %14 = vsyncadd [#allocation5], %s13
      %s15 = sshll.u32 [#allocation4], 4
      %s16 = int_to_ptr.vmem [resolvable:$true] %s15
      %21 = dma.hbm_to_vmem [thread:$0]  %s0, 4096, %s16, [#allocation5], 512, 512, 32
    $region5: #{encoder_rnn_forward.2} parent=1 // pred_fallthru
      _
    // Predicated region
    $region6: #{encoder_rnn_forward.2} parent=1 // pred_check
      _
    $region7: #{encoder_rnn_forward.2} parent=1 // pred_check_branch
      %23 = sbr.rel (0) target = $region9
    $region8: #{encoder_rnn_forward.2} parent=1 // pred_region
      %s25 = ssub.s32 8192, 8192
      %26 = vsyncadd [#allocation8], %s25
      %s27 = sshll.u32 [#allocation7], 4
      %s28 = int_to_ptr.vmem [resolvable:$true] %s27
      %33 = dma.hbm_to_vmem [thread:$0]  %s1, 8192, %s28, [#allocation8], 512, 512, 32
    $region9: #{encoder_rnn_forward.2} parent=1 // pred_fallthru
      _
    // Predicated region
    $region10: #{encoder_rnn_forward.2} parent=1 // pred_check
      _
    $region11: #{encoder_rnn_forward.2} parent=1 // pred_check_branch
      %35 = sbr.rel (0) target = $region13
    $region12: #{encoder_rnn_forward.2} parent=1 // pred_region
      %36 = dma.done [#allocation5], 4096
    $region13: #{encoder_rnn_forward.2} parent=1 // pred_fallthru
      _
    // Predicated region
    $region14: #{encoder_rnn_forward.2} parent=1 // pred_check
      _
    $region15: #{encoder_rnn_forward.2} parent=1 // pred_check_branch
      %38 = sbr.rel (0) target = $region17
    $region16: #{encoder_rnn_forward.2} parent=1 // pred_region
      %39 = dma.done [#allocation8], 8192
    $region17: #{encoder_rnn_forward.2} parent=1 // pred_fallthru
      _
    %p40 = scmp.eq.s32.totalorder 0, 0
    // Predicated region
    $region18: #{encoder_rnn_forward.2} parent=1 // pred_check
      %p41 = pneg %p40
    $region19: #{encoder_rnn_forward.2} parent=1 // pred_check_branch
      %43 = sbr.rel (%p41) target = $region21
    $region20: #{encoder_rnn_forward.2} parent=1 // pred_region
      %44 = vst [vmem:[#allocation2] sm:$0xff] 0.0
      %45 = vst [vmem:[#allocation3] sm:$0xff] 0.0
    $region21: #{encoder_rnn_forward.2} parent=1 // pred_fallthru
      _
    %v46 = vld [vmem:[#allocation2] sm:$0xff]
    %v47 = vld [vmem:[#allocation3] sm:$0xff]
    %v48 = vld [vmem:[#allocation4] sm:$0xff]
    %v49 = vld [vmem:[#allocation4 + $0x8] sm:$0xff]
    %v50 = vld [vmem:[#allocation4 + $0x10] sm:$0xff]
    %v51 = vld [vmem:[#allocation4 + $0x18] sm:$0xff]
    %v52 = vld [vmem:[#allocation7] sm:$0xff]
    %v53 = vld [vmem:[#allocation7 + $0x8] sm:$0xff]
    %v54 = vld [vmem:[#allocation7 + $0x10] sm:$0xff]
    %v55 = vld [vmem:[#allocation7 + $0x18] sm:$0xff]
    %v56 = vld [vmem:[#allocation7 + $0x20] sm:$0xff]
    %v57 = vld [vmem:[#allocation7 + $0x28] sm:$0xff]
    %v58 = vld [vmem:[#allocation7 + $0x30] sm:$0xff]
    %v59 = vld [vmem:[#allocation7 + $0x38] sm:$0xff]
    %v60 = vld [vmem:[#allocation7 + $0x40] sm:$0xff]
    %v61 = vld [vmem:[#allocation7 + $0x48] sm:$0xff]
    %v62 = vld [vmem:[#allocation7 + $0x50] sm:$0xff]
    %v63 = vld [vmem:[#allocation7 + $0x58] sm:$0xff]
    %v64 = vld [vmem:[#allocation7 + $0x60] sm:$0xff]
    %v65 = vld [vmem:[#allocation7 + $0x68] sm:$0xff]
    %v66 = vld [vmem:[#allocation7 + $0x70] sm:$0xff]
    %v67 = vld [vmem:[#allocation7 + $0x78] sm:$0xff]
    %v68 = vld [vmem:[#allocation7 + $0x80] sm:$0xff]
    %v69 = vld [vmem:[#allocation7 + $0x88] sm:$0xff]
    %v70 = vld [vmem:[#allocation7 + $0x90] sm:$0xff]
    %v71 = vld [vmem:[#allocation7 + $0x98] sm:$0xff]
    %v72 = vld [vmem:[#allocation7 + $0xa0] sm:$0xff]
    %v73 = vld [vmem:[#allocation7 + $0xa8] sm:$0xff]
    %v74 = vld [vmem:[#allocation7 + $0xb0] sm:$0xff]
    %v75 = vld [vmem:[#allocation7 + $0xb8] sm:$0xff]
    %v76 = vld [vmem:[#allocation7 + $0xc0] sm:$0xff]
    %v77 = vld [vmem:[#allocation7 + $0xc8] sm:$0xff]
    %v78 = vld [vmem:[#allocation7 + $0xd0] sm:$0xff]
    %v79 = vld [vmem:[#allocation7 + $0xd8] sm:$0xff]
    %v80 = vld [vmem:[#allocation7 + $0xe0] sm:$0xff]
    %v81 = vld [vmem:[#allocation7 + $0xe8] sm:$0xff]
    %v82 = vld [vmem:[#allocation7 + $0xf0] sm:$0xff]
    %v83 = vld [vmem:[#allocation7 + $0xf8] sm:$0xff]
    %v84 = vld [vmem:[#allocation7 + $0x100] sm:$0xff]
    %v85 = vld [vmem:[#allocation7 + $0x108] sm:$0xff]
    %v86 = vld [vmem:[#allocation7 + $0x110] sm:$0xff]
    %v87 = vld [vmem:[#allocation7 + $0x118] sm:$0xff]
    %v88 = vld [vmem:[#allocation7 + $0x120] sm:$0xff]
    %v89 = vld [vmem:[#allocation7 + $0x128] sm:$0xff]
    %v90 = vld [vmem:[#allocation7 + $0x130] sm:$0xff]
    %v91 = vld [vmem:[#allocation7 + $0x138] sm:$0xff]
    %v92 = vld [vmem:[#allocation7 + $0x140] sm:$0xff]
    %v93 = vld [vmem:[#allocation7 + $0x148] sm:$0xff]
    %v94 = vld [vmem:[#allocation7 + $0x150] sm:$0xff]
    %v95 = vld [vmem:[#allocation7 + $0x158] sm:$0xff]
    %v96 = vld [vmem:[#allocation7 + $0x160] sm:$0xff]
    %v97 = vld [vmem:[#allocation7 + $0x168] sm:$0xff]
    %v98 = vld [vmem:[#allocation7 + $0x170] sm:$0xff]
    %v99 = vld [vmem:[#allocation7 + $0x178] sm:$0xff]
    %v100 = vld [vmem:[#allocation7 + $0x180] sm:$0xff]
    %v101 = vld [vmem:[#allocation7 + $0x188] sm:$0xff]
    %v102 = vld [vmem:[#allocation7 + $0x190] sm:$0xff]
    %v103 = vld [vmem:[#allocation7 + $0x198] sm:$0xff]
    %v104 = vld [vmem:[#allocation7 + $0x1a0] sm:$0xff]
    %v105 = vld [vmem:[#allocation7 + $0x1a8] sm:$0xff]
    %v106 = vld [vmem:[#allocation7 + $0x1b0] sm:$0xff]
    %v107 = vld [vmem:[#allocation7 + $0x1b8] sm:$0xff]
    %v108 = vld [vmem:[#allocation7 + $0x1c0] sm:$0xff]
    %v109 = vld [vmem:[#allocation7 + $0x1c8] sm:$0xff]
    %v110 = vld [vmem:[#allocation7 + $0x1d0] sm:$0xff]
    %v111 = vld [vmem:[#allocation7 + $0x1d8] sm:$0xff]
    %v112 = vld [vmem:[#allocation7 + $0x1e0] sm:$0xff]
    %v113 = vld [vmem:[#allocation7 + $0x1e8] sm:$0xff]
    %v114 = vld [vmem:[#allocation7 + $0x1f0] sm:$0xff]
    %v115 = vld [vmem:[#allocation7 + $0x1f8] sm:$0xff]
    %116 = vmatprep.subr.mxu0 %v53
    %117 = vmatpush1.msra.mxu0 %v52
    %118 = vmatprep.subr.mxu0 %v57
    %119 = vmatpush1.msra.mxu0 %v56
    %120 = vmatprep.subr.mxu0 %v61
    %121 = vmatpush1.msra.mxu0 %v60
    %122 = vmatprep.subr.mxu0 %v65
    %123 = vmatpush1.msra.mxu0 %v64
    %124 = vmatprep.subr.mxu0 %v69
    %125 = vmatpush1.msra.mxu0 %v68
    %126 = vmatprep.subr.mxu0 %v73
    %127 = vmatpush1.msra.mxu0 %v72
    %128 = vmatprep.subr.mxu0 %v77
    %129 = vmatpush1.msra.mxu0 %v76
    %130 = vmatprep.subr.mxu0 %v81
    %131 = vmatpush1.msra.mxu0 %v80
    %132 = vmatprep.subr.mxu0 %v85
    %133 = vmatpush1.msra.mxu0 %v84
    %134 = vmatprep.subr.mxu0 %v89
    %135 = vmatpush1.msra.mxu0 %v88
    %136 = vmatprep.subr.mxu0 %v93
    %137 = vmatpush1.msra.mxu0 %v92
    %138 = vmatprep.subr.mxu0 %v97
    %139 = vmatpush1.msra.mxu0 %v96
    %140 = vmatprep.subr.mxu0 %v101
    %141 = vmatpush1.msra.mxu0 %v100
    %142 = vmatprep.subr.mxu0 %v105
    %143 = vmatpush1.msra.mxu0 %v104
    %144 = vmatprep.subr.mxu0 %v109
    %145 = vmatpush1.msra.mxu0 %v108
    %146 = vmatprep.subr.mxu0 %v113
    %147 = vmatpush1.msra.mxu0 %v112
    %148 = vmatprep.subr.mxu0 0.0
    %149 = vmatpush1.msra.mxu0 0.0
    %150 = vmatprep.subr.mxu0 0.0
    %151 = vmatpush1.msra.mxu0 0.0
    %152 = vmatprep.subr.mxu0 0.0
    %153 = vmatpush1.msra.mxu0 0.0
    %154 = vmatprep.subr.mxu0 0.0
    %155 = vmatpush1.msra.mxu0 0.0
    %156 = vmatprep.subr.mxu0 0.0
    %157 = vmatpush1.msra.mxu0 0.0
    %158 = vmatprep.subr.mxu0 0.0
    %159 = vmatpush1.msra.mxu0 0.0
    %160 = vmatprep.subr.mxu0 0.0
    %161 = vmatpush1.msra.mxu0 0.0
    %162 = vmatprep.subr.mxu0 0.0
    %163 = vmatpush1.msra.mxu0 0.0
    %164 = vmatprep.subr.mxu0 0.0
    %165 = vmatpush1.msra.mxu0 0.0
    %166 = vmatprep.subr.mxu0 0.0
    %167 = vmatpush1.msra.mxu0 0.0
    %168 = vmatprep.subr.mxu0 0.0
    %169 = vmatpush1.msra.mxu0 0.0
    %170 = vmatprep.subr.mxu0 0.0
    %171 = vmatpush1.msra.mxu0 0.0
    %172 = vmatprep.subr.mxu0 0.0
    %173 = vmatpush1.msra.mxu0 0.0
    %174 = vmatprep.subr.mxu0 0.0
    %175 = vmatpush1.msra.mxu0 0.0
    %176 = vmatprep.subr.mxu0 0.0
    %177 = vmatpush1.msra.mxu0 0.0
    %178 = vmatprep.subr.mxu0 0.0
    %179 = vmatpush1.msra.mxu0 0.0
    %180 = vmatprep.mubr.f32.mxu0 0.0
    %181 = vmatmul.mubr.f32.gmra.mrb[0].mxu0 %v46
    %v182 = vpop.f32.mrb[0].mxu0
    %v183 = vadd.f32 0.0, %v182
    %v184 = vpop.f32.mrb[0].mxu0
    %v185 = vadd.f32 0.0, %v184
    %186 = vdwg.mxu0
    %187 = vmatprep.subr.mxu0 %v55
    %188 = vmatpush1.msra.mxu0 %v54
    %189 = vmatprep.subr.mxu0 %v59
    %190 = vmatpush1.msra.mxu0 %v58
    %191 = vmatprep.subr.mxu0 %v63
    %192 = vmatpush1.msra.mxu0 %v62
    %193 = vmatprep.subr.mxu0 %v67
    %194 = vmatpush1.msra.mxu0 %v66
    %195 = vmatprep.subr.mxu0 %v71
    %196 = vmatpush1.msra.mxu0 %v70
    %197 = vmatprep.subr.mxu0 %v75
    %198 = vmatpush1.msra.mxu0 %v74
    %199 = vmatprep.subr.mxu0 %v79
    %200 = vmatpush1.msra.mxu0 %v78
    %201 = vmatprep.subr.mxu0 %v83
    %202 = vmatpush1.msra.mxu0 %v82
    %203 = vmatprep.subr.mxu0 %v87
    %204 = vmatpush1.msra.mxu0 %v86
    %205 = vmatprep.subr.mxu0 %v91
    %206 = vmatpush1.msra.mxu0 %v90
    %207 = vmatprep.subr.mxu0 %v95
    %208 = vmatpush1.msra.mxu0 %v94
    %209 = vmatprep.subr.mxu0 %v99
    %210 = vmatpush1.msra.mxu0 %v98
    %211 = vmatprep.subr.mxu0 %v103
    %212 = vmatpush1.msra.mxu0 %v102
    %213 = vmatprep.subr.mxu0 %v107
    %214 = vmatpush1.msra.mxu0 %v106
    %215 = vmatprep.subr.mxu0 %v111
    %216 = vmatpush1.msra.mxu0 %v110
    %217 = vmatprep.subr.mxu0 %v115
    %218 = vmatpush1.msra.mxu0 %v114
    %219 = vmatprep.subr.mxu0 0.0
    %220 = vmatpush1.msra.mxu0 0.0
    %221 = vmatprep.subr.mxu0 0.0
    %222 = vmatpush1.msra.mxu0 0.0
    %223 = vmatprep.subr.mxu0 0.0
    %224 = vmatpush1.msra.mxu0 0.0
    %225 = vmatprep.subr.mxu0 0.0
    %226 = vmatpush1.msra.mxu0 0.0
    %227 = vmatprep.subr.mxu0 0.0
    %228 = vmatpush1.msra.mxu0 0.0
    %229 = vmatprep.subr.mxu0 0.0
    %230 = vmatpush1.msra.mxu0 0.0
    %231 = vmatprep.subr.mxu0 0.0
    %232 = vmatpush1.msra.mxu0 0.0
    %233 = vmatprep.subr.mxu0 0.0
    %234 = vmatpush1.msra.mxu0 0.0
    %235 = vmatprep.subr.mxu0 0.0
    %236 = vmatpush1.msra.mxu0 0.0
    %237 = vmatprep.subr.mxu0 0.0
    %238 = vmatpush1.msra.mxu0 0.0
    %239 = vmatprep.subr.mxu0 0.0
    %240 = vmatpush1.msra.mxu0 0.0
    %241 = vmatprep.subr.mxu0 0.0
    %242 = vmatpush1.msra.mxu0 0.0
    %243 = vmatprep.subr.mxu0 0.0
    %244 = vmatpush1.msra.mxu0 0.0
    %245 = vmatprep.subr.mxu0 0.0
    %246 = vmatpush1.msra.mxu0 0.0
    %247 = vmatprep.subr.mxu0 0.0
    %248 = vmatpush1.msra.mxu0 0.0
    %249 = vmatprep.subr.mxu0 0.0
    %250 = vmatpush1.msra.mxu0 0.0
    %251 = vmatprep.mubr.f32.mxu0 0.0
    %252 = vmatmul.mubr.f32.gmra.mrb[0].mxu0 %v46
    %v253 = vpop.f32.mrb[0].mxu0
    %v254 = vadd.f32 0.0, %v253
    %v255 = vpop.f32.mrb[0].mxu0
    %v256 = vadd.f32 0.0, %v255
    %257 = vdwg.mxu0
    %v258 = vadd.f32 %v48, %v183
    %v259 = vadd.f32 %v49, %v185
    %v260 = vadd.f32 %v50, %v254
    %v261 = vadd.f32 %v51, %v256
    %v262 = vxor.u32 %v258, 2147483648
    %v263 = vmul.f32 %v262, 1.442695
    %v264 = vpow.pop %v263
    %v265 = vadd.f32 %v264, 1.0
    %v266 = vrcp.pop %v265
    %v267 = vmul.f32 1.0, %v266
    %v268 = vxor.u32 %v259, 2147483648
    %v269 = vmul.f32 %v268, 1.442695
    %v270 = vpow.pop %v269
    %v271 = vadd.f32 %v270, 1.0
    %v272 = vrcp.pop %v271
    %v273 = vmul.f32 1.0, %v272
    %v274 = vtanh.pop %v260
    %v275 = vxor.u32 %v261, 2147483648
    %v276 = vmul.f32 %v275, 1.442695
    %v277 = vpow.pop %v276
    %v278 = vadd.f32 %v277, 1.0
    %v279 = vrcp.pop %v278
    %v280 = vmul.f32 1.0, %v279
    %v281 = vmul.f32 %v273, %v47
    %v282 = vmul.f32 %v267, %v274
    %v283 = vadd.f32 %v281, %v282
    %v284 = vtanh.pop %v283
    %v285 = vmul.f32 %v280, %v284
    %286 = vst [vmem:[#allocation2] sm:$0xff] %v285
    %287 = vst [vmem:[#allocation3] sm:$0xff] %v283
    %288 = vst [vmem:[#allocation9] sm:$0xff] %v285
    %v289 = vld [vmem:[#allocation2] sm:$0xff]
    %v290 = vld [vmem:[#allocation3] sm:$0xff]
    %s291 = scalar_lea.vmem [#allocation4], 32
    %v292 = vld [vmem:[%s291] sm:$0xff]
    %v293 = vld [vmem:[%s291 + $0x8] sm:$0xff]
    %v294 = vld [vmem:[%s291 + $0x10] sm:$0xff]
    %v295 = vld [vmem:[%s291 + $0x18] sm:$0xff]
    %v296 = vld [vmem:[#allocation7] sm:$0xff]
    %v297 = vld [vmem:[#allocation7 + $0x8] sm:$0xff]
    %v298 = vld [vmem:[#allocation7 + $0x10] sm:$0xff]
    %v299 = vld [vmem:[#allocation7 + $0x18] sm:$0xff]
    %v300 = vld [vmem:[#allocation7 + $0x20] sm:$0xff]
    %v301 = vld [vmem:[#allocation7 + $0x28] sm:$0xff]
    %v302 = vld [vmem:[#allocation7 + $0x30] sm:$0xff]
    %v303 = vld [vmem:[#allocation7 + $0x38] sm:$0xff]
    %v304 = vld [vmem:[#allocation7 + $0x40] sm:$0xff]
    %v305 = vld [vmem:[#allocation7 + $0x48] sm:$0xff]
    %v306 = vld [vmem:[#allocation7 + $0x50] sm:$0xff]
    %v307 = vld [vmem:[#allocation7 + $0x58] sm:$0xff]
    %v308 = vld [vmem:[#allocation7 + $0x60] sm:$0xff]
    %v309 = vld [vmem:[#allocation7 + $0x68] sm:$0xff]
    %v310 = vld [vmem:[#allocation7 + $0x70] sm:$0xff]
    %v311 = vld [vmem:[#allocation7 + $0x78] sm:$0xff]
    %v312 = vld [vmem:[#allocation7 + $0x80] sm:$0xff]
    %v313 = vld [vmem:[#allocation7 + $0x88] sm:$0xff]
    %v314 = vld [vmem:[#allocation7 + $0x90] sm:$0xff]
    %v315 = vld [vmem:[#allocation7 + $0x98] sm:$0xff]
    %v316 = vld [vmem:[#allocation7 + $0xa0] sm:$0xff]
    %v317 = vld [vmem:[#allocation7 + $0xa8] sm:$0xff]
    %v318 = vld [vmem:[#allocation7 + $0xb0] sm:$0xff]
    %v319 = vld [vmem:[#allocation7 + $0xb8] sm:$0xff]
    %v320 = vld [vmem:[#allocation7 + $0xc0] sm:$0xff]
    %v321 = vld [vmem:[#allocation7 + $0xc8] sm:$0xff]
    %v322 = vld [vmem:[#allocation7 + $0xd0] sm:$0xff]
    %v323 = vld [vmem:[#allocation7 + $0xd8] sm:$0xff]
    %v324 = vld [vmem:[#allocation7 + $0xe0] sm:$0xff]
    %v325 = vld [vmem:[#allocation7 + $0xe8] sm:$0xff]
    %v326 = vld [vmem:[#allocation7 + $0xf0] sm:$0xff]
    %v327 = vld [vmem:[#allocation7 + $0xf8] sm:$0xff]
    %v328 = vld [vmem:[#allocation7 + $0x100] sm:$0xff]
    %v329 = vld [vmem:[#allocation7 + $0x108] sm:$0xff]
    %v330 = vld [vmem:[#allocation7 + $0x110] sm:$0xff]
    %v331 = vld [vmem:[#allocation7 + $0x118] sm:$0xff]
    %v332 = vld [vmem:[#allocation7 + $0x120] sm:$0xff]
    %v333 = vld [vmem:[#allocation7 + $0x128] sm:$0xff]
    %v334 = vld [vmem:[#allocation7 + $0x130] sm:$0xff]
    %v335 = vld [vmem:[#allocation7 + $0x138] sm:$0xff]
    %v336 = vld [vmem:[#allocation7 + $0x140] sm:$0xff]
    %v337 = vld [vmem:[#allocation7 + $0x148] sm:$0xff]
    %v338 = vld [vmem:[#allocation7 + $0x150] sm:$0xff]
    %v339 = vld [vmem:[#allocation7 + $0x158] sm:$0xff]
    %v340 = vld [vmem:[#allocation7 + $0x160] sm:$0xff]
    %v341 = vld [vmem:[#allocation7 + $0x168] sm:$0xff]
    %v342 = vld [vmem:[#allocation7 + $0x170] sm:$0xff]
    %v343 = vld [vmem:[#allocation7 + $0x178] sm:$0xff]
    %v344 = vld [vmem:[#allocation7 + $0x180] sm:$0xff]
    %v345 = vld [vmem:[#allocation7 + $0x188] sm:$0xff]
    %v346 = vld [vmem:[#allocation7 + $0x190] sm:$0xff]
    %v347 = vld [vmem:[#allocation7 + $0x198] sm:$0xff]
    %v348 = vld [vmem:[#allocation7 + $0x1a0] sm:$0xff]
    %v349 = vld [vmem:[#allocation7 + $0x1a8] sm:$0xff]
    %v350 = vld [vmem:[#allocation7 + $0x1b0] sm:$0xff]
    %v351 = vld [vmem:[#allocation7 + $0x1b8] sm:$0xff]
    %v352 = vld [vmem:[#allocation7 + $0x1c0] sm:$0xff]
    %v353 = vld [vmem:[#allocation7 + $0x1c8] sm:$0xff]
    %v354 = vld [vmem:[#allocation7 + $0x1d0] sm:$0xff]
    %v355 = vld [vmem:[#allocation7 + $0x1d8] sm:$0xff]
    %v356 = vld [vmem:[#allocation7 + $0x1e0] sm:$0xff]
    %v357 = vld [vmem:[#allocation7 + $0x1e8] sm:$0xff]
    %v358 = vld [vmem:[#allocation7 + $0x1f0] sm:$0xff]
    %v359 = vld [vmem:[#allocation7 + $0x1f8] sm:$0xff]
    %360 = vmatprep.subr.mxu0 %v297
    %361 = vmatpush1.msra.mxu0 %v296
    %362 = vmatprep.subr.mxu0 %v301
    %363 = vmatpush1.msra.mxu0 %v300
    %364 = vmatprep.subr.mxu0 %v305
    %365 = vmatpush1.msra.mxu0 %v304
    %366 = vmatprep.subr.mxu0 %v309
    %367 = vmatpush1.msra.mxu0 %v308
    %368 = vmatprep.subr.mxu0 %v313
    %369 = vmatpush1.msra.mxu0 %v312
    %370 = vmatprep.subr.mxu0 %v317
    %371 = vmatpush1.msra.mxu0 %v316
    %372 = vmatprep.subr.mxu0 %v321
    %373 = vmatpush1.msra.mxu0 %v320
    %374 = vmatprep.subr.mxu0 %v325
    %375 = vmatpush1.msra.mxu0 %v324
    %376 = vmatprep.subr.mxu0 %v329
    %377 = vmatpush1.msra.mxu0 %v328
    %378 = vmatprep.subr.mxu0 %v333
    %379 = vmatpush1.msra.mxu0 %v332
    %380 = vmatprep.subr.mxu0 %v337
    %381 = vmatpush1.msra.mxu0 %v336
    %382 = vmatprep.subr.mxu0 %v341
    %383 = vmatpush1.msra.mxu0 %v340
    %384 = vmatprep.subr.mxu0 %v345
    %385 = vmatpush1.msra.mxu0 %v344
    %386 = vmatprep.subr.mxu0 %v349
    %387 = vmatpush1.msra.mxu0 %v348
    %388 = vmatprep.subr.mxu0 %v353
    %389 = vmatpush1.msra.mxu0 %v352
    %390 = vmatprep.subr.mxu0 %v357
    %391 = vmatpush1.msra.mxu0 %v356
    %392 = vmatprep.subr.mxu0 0.0
    %393 = vmatpush1.msra.mxu0 0.0
    %394 = vmatprep.subr.mxu0 0.0
    %395 = vmatpush1.msra.mxu0 0.0
    %396 = vmatprep.subr.mxu0 0.0
    %397 = vmatpush1.msra.mxu0 0.0
    %398 = vmatprep.subr.mxu0 0.0
    %399 = vmatpush1.msra.mxu0 0.0
    %400 = vmatprep.subr.mxu0 0.0
    %401 = vmatpush1.msra.mxu0 0.0
    %402 = vmatprep.subr.mxu0 0.0
    %403 = vmatpush1.msra.mxu0 0.0
    %404 = vmatprep.subr.mxu0 0.0
    %405 = vmatpush1.msra.mxu0 0.0
    %406 = vmatprep.subr.mxu0 0.0
    %407 = vmatpush1.msra.mxu0 0.0
    %408 = vmatprep.subr.mxu0 0.0
    %409 = vmatpush1.msra.mxu0 0.0
    %410 = vmatprep.subr.mxu0 0.0
    %411 = vmatpush1.msra.mxu0 0.0
    %412 = vmatprep.subr.mxu0 0.0
    %413 = vmatpush1.msra.mxu0 0.0
    %414 = vmatprep.subr.mxu0 0.0
    %415 = vmatpush1.msra.mxu0 0.0
    %416 = vmatprep.subr.mxu0 0.0
    %417 = vmatpush1.msra.mxu0 0.0
    %418 = vmatprep.subr.mxu0 0.0
    %419 = vmatpush1.msra.mxu0 0.0
    %420 = vmatprep.subr.mxu0 0.0
    %421 = vmatpush1.msra.mxu0 0.0
    %422 = vmatprep.subr.mxu0 0.0
    %423 = vmatpush1.msra.mxu0 0.0
    %424 = vmatprep.mubr.f32.mxu0 0.0
    %425 = vmatmul.mubr.f32.gmra.mrb[0].mxu0 %v289
    %v426 = vpop.f32.mrb[0].mxu0
    %v427 = vadd.f32 0.0, %v426
    %v428 = vpop.f32.mrb[0].mxu0
    %v429 = vadd.f32 0.0, %v428
    %430 = vdwg.mxu0
    %431 = vmatprep.subr.mxu0 %v299
    %432 = vmatpush1.msra.mxu0 %v298
    %433 = vmatprep.subr.mxu0 %v303
    %434 = vmatpush1.msra.mxu0 %v302
    %435 = vmatprep.subr.mxu0 %v307
    %436 = vmatpush1.msra.mxu0 %v306
    %437 = vmatprep.subr.mxu0 %v311
    %438 = vmatpush1.msra.mxu0 %v310
    %439 = vmatprep.subr.mxu0 %v315
    %440 = vmatpush1.msra.mxu0 %v314
    %441 = vmatprep.subr.mxu0 %v319
    %442 = vmatpush1.msra.mxu0 %v318
    %443 = vmatprep.subr.mxu0 %v323
    %444 = vmatpush1.msra.mxu0 %v322
    %445 = vmatprep.subr.mxu0 %v327
    %446 = vmatpush1.msra.mxu0 %v326
    %447 = vmatprep.subr.mxu0 %v331
    %448 = vmatpush1.msra.mxu0 %v330
    %449 = vmatprep.subr.mxu0 %v335
    %450 = vmatpush1.msra.mxu0 %v334
    %451 = vmatprep.subr.mxu0 %v339
    %452 = vmatpush1.msra.mxu0 %v338
    %453 = vmatprep.subr.mxu0 %v343
    %454 = vmatpush1.msra.mxu0 %v342
    %455 = vmatprep.subr.mxu0 %v347
    %456 = vmatpush1.msra.mxu0 %v346
    %457 = vmatprep.subr.mxu0 %v351
    %458 = vmatpush1.msra.mxu0 %v350
    %459 = vmatprep.subr.mxu0 %v355
    %460 = vmatpush1.msra.mxu0 %v354
    %461 = vmatprep.subr.mxu0 %v359
    %462 = vmatpush1.msra.mxu0 %v358
    %463 = vmatprep.subr.mxu0 0.0
    %464 = vmatpush1.msra.mxu0 0.0
    %465 = vmatprep.subr.mxu0 0.0
    %466 = vmatpush1.msra.mxu0 0.0
    %467 = vmatprep.subr.mxu0 0.0
    %468 = vmatpush1.msra.mxu0 0.0
    %469 = vmatprep.subr.mxu0 0.0
    %470 = vmatpush1.msra.mxu0 0.0
    %471 = vmatprep.subr.mxu0 0.0
    %472 = vmatpush1.msra.mxu0 0.0
    %473 = vmatprep.subr.mxu0 0.0
    %474 = vmatpush1.msra.mxu0 0.0
    %475 = vmatprep.subr.mxu0 0.0
    %476 = vmatpush1.msra.mxu0 0.0
    %477 = vmatprep.subr.mxu0 0.0
    %478 = vmatpush1.msra.mxu0 0.0
    %479 = vmatprep.subr.mxu0 0.0
    %480 = vmatpush1.msra.mxu0 0.0
    %481 = vmatprep.subr.mxu0 0.0
    %482 = vmatpush1.msra.mxu0 0.0
    %483 = vmatprep.subr.mxu0 0.0
    %484 = vmatpush1.msra.mxu0 0.0
    %485 = vmatprep.subr.mxu0 0.0
    %486 = vmatpush1.msra.mxu0 0.0
    %487 = vmatprep.subr.mxu0 0.0
    %488 = vmatpush1.msra.mxu0 0.0
    %489 = vmatprep.subr.mxu0 0.0
    %490 = vmatpush1.msra.mxu0 0.0
    %491 = vmatprep.subr.mxu0 0.0
    %492 = vmatpush1.msra.mxu0 0.0
    %493 = vmatprep.subr.mxu0 0.0
    %494 = vmatpush1.msra.mxu0 0.0
    %495 = vmatprep.mubr.f32.mxu0 0.0
    %496 = vmatmul.mubr.f32.gmra.mrb[0].mxu0 %v289
    %v497 = vpop.f32.mrb[0].mxu0
    %v498 = vadd.f32 0.0, %v497
    %v499 = vpop.f32.mrb[0].mxu0
    %v500 = vadd.f32 0.0, %v499
    %501 = vdwg.mxu0
    %v502 = vadd.f32 %v292, %v427
    %v503 = vadd.f32 %v293, %v429
    %v504 = vadd.f32 %v294, %v498
    %v505 = vadd.f32 %v295, %v500
    %v506 = vxor.u32 %v502, 2147483648
    %v507 = vmul.f32 %v506, 1.442695
    %v508 = vpow.pop %v507
    %v509 = vadd.f32 %v508, 1.0
    %v510 = vrcp.pop %v509
    %v511 = vmul.f32 1.0, %v510
    %v512 = vxor.u32 %v503, 2147483648
    %v513 = vmul.f32 %v512, 1.442695
    %v514 = vpow.pop %v513
    %v515 = vadd.f32 %v514, 1.0
    %v516 = vrcp.pop %v515
    %v517 = vmul.f32 1.0, %v516
    %v518 = vtanh.pop %v504
    %v519 = vxor.u32 %v505, 2147483648
    %v520 = vmul.f32 %v519, 1.442695
    %v521 = vpow.pop %v520
    %v522 = vadd.f32 %v521, 1.0
    %v523 = vrcp.pop %v522
    %v524 = vmul.f32 1.0, %v523
    %v525 = vmul.f32 %v517, %v290
    %v526 = vmul.f32 %v511, %v518
    %v527 = vadd.f32 %v525, %v526
    %v528 = vtanh.pop %v527
    %v529 = vmul.f32 %v524, %v528
    %530 = vst [vmem:[#allocation2] sm:$0xff] %v529
    %531 = vst [vmem:[#allocation3] sm:$0xff] %v527
    %s532 = scalar_lea.vmem [#allocation9], 8
    %533 = vst [vmem:[%s532] sm:$0xff] %v529
    %v534 = vld [vmem:[#allocation2] sm:$0xff]
    %v535 = vld [vmem:[#allocation3] sm:$0xff]
    %s536 = scalar_lea.vmem [#allocation4], 64
    %v537 = vld [vmem:[%s536] sm:$0xff]
    %v538 = vld [vmem:[%s536 + $0x8] sm:$0xff]
    %v539 = vld [vmem:[%s536 + $0x10] sm:$0xff]
    %v540 = vld [vmem:[%s536 + $0x18] sm:$0xff]
    %v541 = vld [vmem:[#allocation7] sm:$0xff]
    %v542 = vld [vmem:[#allocation7 + $0x8] sm:$0xff]
    %v543 = vld [vmem:[#allocation7 + $0x10] sm:$0xff]
    %v544 = vld [vmem:[#allocation7 + $0x18] sm:$0xff]
    %v545 = vld [vmem:[#allocation7 + $0x20] sm:$0xff]
    %v546 = vld [vmem:[#allocation7 + $0x28] sm:$0xff]
    %v547 = vld [vmem:[#allocation7 + $0x30] sm:$0xff]
    %v548 = vld [vmem:[#allocation7 + $0x38] sm:$0xff]
    %v549 = vld [vmem:[#allocation7 + $0x40] sm:$0xff]
    %v550 = vld [vmem:[#allocation7 + $0x48] sm:$0xff]
    %v551 = vld [vmem:[#allocation7 + $0x50] sm:$0xff]
    %v552 = vld [vmem:[#allocation7 + $0x58] sm:$0xff]
    %v553 = vld [vmem:[#allocation7 + $0x60] sm:$0xff]
    %v554 = vld [vmem:[#allocation7 + $0x68] sm:$0xff]
    %v555 = vld [vmem:[#allocation7 + $0x70] sm:$0xff]
    %v556 = vld [vmem:[#allocation7 + $0x78] sm:$0xff]
    %v557 = vld [vmem:[#allocation7 + $0x80] sm:$0xff]
    %v558 = vld [vmem:[#allocation7 + $0x88] sm:$0xff]
    %v559 = vld [vmem:[#allocation7 + $0x90] sm:$0xff]
    %v560 = vld [vmem:[#allocation7 + $0x98] sm:$0xff]
    %v561 = vld [vmem:[#allocation7 + $0xa0] sm:$0xff]
    %v562 = vld [vmem:[#allocation7 + $0xa8] sm:$0xff]
    %v563 = vld [vmem:[#allocation7 + $0xb0] sm:$0xff]
    %v564 = vld [vmem:[#allocation7 + $0xb8] sm:$0xff]
    %v565 = vld [vmem:[#allocation7 + $0xc0] sm:$0xff]
    %v566 = vld [vmem:[#allocation7 + $0xc8] sm:$0xff]
    %v567 = vld [vmem:[#allocation7 + $0xd0] sm:$0xff]
    %v568 = vld [vmem:[#allocation7 + $0xd8] sm:$0xff]
    %v569 = vld [vmem:[#allocation7 + $0xe0] sm:$0xff]
    %v570 = vld [vmem:[#allocation7 + $0xe8] sm:$0xff]
    %v571 = vld [vmem:[#allocation7 + $0xf0] sm:$0xff]
    %v572 = vld [vmem:[#allocation7 + $0xf8] sm:$0xff]
    %v573 = vld [vmem:[#allocation7 + $0x100] sm:$0xff]
    %v574 = vld [vmem:[#allocation7 + $0x108] sm:$0xff]
    %v575 = vld [vmem:[#allocation7 + $0x110] sm:$0xff]
    %v576 = vld [vmem:[#allocation7 + $0x118] sm:$0xff]
    %v577 = vld [vmem:[#allocation7 + $0x120] sm:$0xff]
    %v578 = vld [vmem:[#allocation7 + $0x128] sm:$0xff]
    %v579 = vld [vmem:[#allocation7 + $0x130] sm:$0xff]
    %v580 = vld [vmem:[#allocation7 + $0x138] sm:$0xff]
    %v581 = vld [vmem:[#allocation7 + $0x140] sm:$0xff]
    %v582 = vld [vmem:[#allocation7 + $0x148] sm:$0xff]
    %v583 = vld [vmem:[#allocation7 + $0x150] sm:$0xff]
    %v584 = vld [vmem:[#allocation7 + $0x158] sm:$0xff]
    %v585 = vld [vmem:[#allocation7 + $0x160] sm:$0xff]
    %v586 = vld [vmem:[#allocation7 + $0x168] sm:$0xff]
    %v587 = vld [vmem:[#allocation7 + $0x170] sm:$0xff]
    %v588 = vld [vmem:[#allocation7 + $0x178] sm:$0xff]
    %v589 = vld [vmem:[#allocation7 + $0x180] sm:$0xff]
    %v590 = vld [vmem:[#allocation7 + $0x188] sm:$0xff]
    %v591 = vld [vmem:[#allocation7 + $0x190] sm:$0xff]
    %v592 = vld [vmem:[#allocation7 + $0x198] sm:$0xff]
    %v593 = vld [vmem:[#allocation7 + $0x1a0] sm:$0xff]
    %v594 = vld [vmem:[#allocation7 + $0x1a8] sm:$0xff]
    %v595 = vld [vmem:[#allocation7 + $0x1b0] sm:$0xff]
    %v596 = vld [vmem:[#allocation7 + $0x1b8] sm:$0xff]
    %v597 = vld [vmem:[#allocation7 + $0x1c0] sm:$0xff]
    %v598 = vld [vmem:[#allocation7 + $0x1c8] sm:$0xff]
    %v599 = vld [vmem:[#allocation7 + $0x1d0] sm:$0xff]
    %v600 = vld [vmem:[#allocation7 + $0x1d8] sm:$0xff]
    %v601 = vld [vmem:[#allocation7 + $0x1e0] sm:$0xff]
    %v602 = vld [vmem:[#allocation7 + $0x1e8] sm:$0xff]
    %v603 = vld [vmem:[#allocation7 + $0x1f0] sm:$0xff]
    %v604 = vld [vmem:[#allocation7 + $0x1f8] sm:$0xff]
    %605 = vmatprep.subr.mxu0 %v542
    %606 = vmatpush1.msra.mxu0 %v541
    %607 = vmatprep.subr.mxu0 %v546
    %608 = vmatpush1.msra.mxu0 %v545
    %609 = vmatprep.subr.mxu0 %v550
    %610 = vmatpush1.msra.mxu0 %v549
    %611 = vmatprep.subr.mxu0 %v554
    %612 = vmatpush1.msra.mxu0 %v553
    %613 = vmatprep.subr.mxu0 %v558
    %614 = vmatpush1.msra.mxu0 %v557
    %615 = vmatprep.subr.mxu0 %v562
    %616 = vmatpush1.msra.mxu0 %v561
    %617 = vmatprep.subr.mxu0 %v566
    %618 = vmatpush1.msra.mxu0 %v565
    %619 = vmatprep.subr.mxu0 %v570
    %620 = vmatpush1.msra.mxu0 %v569
    %621 = vmatprep.subr.mxu0 %v574
    %622 = vmatpush1.msra.mxu0 %v573
    %623 = vmatprep.subr.mxu0 %v578
    %624 = vmatpush1.msra.mxu0 %v577
    %625 = vmatprep.subr.mxu0 %v582
    %626 = vmatpush1.msra.mxu0 %v581
    %627 = vmatprep.subr.mxu0 %v586
    %628 = vmatpush1.msra.mxu0 %v585
    %629 = vmatprep.subr.mxu0 %v590
    %630 = vmatpush1.msra.mxu0 %v589
    %631 = vmatprep.subr.mxu0 %v594
    %632 = vmatpush1.msra.mxu0 %v593
    %633 = vmatprep.subr.mxu0 %v598
    %634 = vmatpush1.msra.mxu0 %v597
    %635 = vmatprep.subr.mxu0 %v602
    %636 = vmatpush1.msra.mxu0 %v601
    %637 = vmatprep.subr.mxu0 0.0
    %638 = vmatpush1.msra.mxu0 0.0
    %639 = vmatprep.subr.mxu0 0.0
    %640 = vmatpush1.msra.mxu0 0.0
    %641 = vmatprep.subr.mxu0 0.0
    %642 = vmatpush1.msra.mxu0 0.0
    %643 = vmatprep.subr.mxu0 0.0
    %644 = vmatpush1.msra.mxu0 0.0
    %645 = vmatprep.subr.mxu0 0.0
    %646 = vmatpush1.msra.mxu0 0.0
    %647 = vmatprep.subr.mxu0 0.0
    %648 = vmatpush1.msra.mxu0 0.0
    %649 = vmatprep.subr.mxu0 0.0
    %650 = vmatpush1.msra.mxu0 0.0
    %651 = vmatprep.subr.mxu0 0.0
    %652 = vmatpush1.msra.mxu0 0.0
    %653 = vmatprep.subr.mxu0 0.0
    %654 = vmatpush1.msra.mxu0 0.0
    %655 = vmatprep.subr.mxu0 0.0
    %656 = vmatpush1.msra.mxu0 0.0
    %657 = vmatprep.subr.mxu0 0.0
    %658 = vmatpush1.msra.mxu0 0.0
    %659 = vmatprep.subr.mxu0 0.0
    %660 = vmatpush1.msra.mxu0 0.0
    %661 = vmatprep.subr.mxu0 0.0
    %662 = vmatpush1.msra.mxu0 0.0
    %663 = vmatprep.subr.mxu0 0.0
    %664 = vmatpush1.msra.mxu0 0.0
    %665 = vmatprep.subr.mxu0 0.0
    %666 = vmatpush1.msra.mxu0 0.0
    %667 = vmatprep.subr.mxu0 0.0
    %668 = vmatpush1.msra.mxu0 0.0
    %669 = vmatprep.mubr.f32.mxu0 0.0
    %670 = vmatmul.mubr.f32.gmra.mrb[0].mxu0 %v534
    %v671 = vpop.f32.mrb[0].mxu0
    %v672 = vadd.f32 0.0, %v671
    %v673 = vpop.f32.mrb[0].mxu0
    %v674 = vadd.f32 0.0, %v673
    %675 = vdwg.mxu0
    %676 = vmatprep.subr.mxu0 %v544
    %677 = vmatpush1.msra.mxu0 %v543
    %678 = vmatprep.subr.mxu0 %v548
    %679 = vmatpush1.msra.mxu0 %v547
    %680 = vmatprep.subr.mxu0 %v552
    %681 = vmatpush1.msra.mxu0 %v551
    %682 = vmatprep.subr.mxu0 %v556
    %683 = vmatpush1.msra.mxu0 %v555
    %684 = vmatprep.subr.mxu0 %v560
    %685 = vmatpush1.msra.mxu0 %v559
    %686 = vmatprep.subr.mxu0 %v564
    %687 = vmatpush1.msra.mxu0 %v563
    %688 = vmatprep.subr.mxu0 %v568
    %689 = vmatpush1.msra.mxu0 %v567
    %690 = vmatprep.subr.mxu0 %v572
    %691 = vmatpush1.msra.mxu0 %v571
    %692 = vmatprep.subr.mxu0 %v576
    %693 = vmatpush1.msra.mxu0 %v575
    %694 = vmatprep.subr.mxu0 %v580
    %695 = vmatpush1.msra.mxu0 %v579
    %696 = vmatprep.subr.mxu0 %v584
    %697 = vmatpush1.msra.mxu0 %v583
    %698 = vmatprep.subr.mxu0 %v588
    %699 = vmatpush1.msra.mxu0 %v587
    %700 = vmatprep.subr.mxu0 %v592
    %701 = vmatpush1.msra.mxu0 %v591
    %702 = vmatprep.subr.mxu0 %v596
    %703 = vmatpush1.msra.mxu0 %v595
    %704 = vmatprep.subr.mxu0 %v600
    %705 = vmatpush1.msra.mxu0 %v599
    %706 = vmatprep.subr.mxu0 %v604
    %707 = vmatpush1.msra.mxu0 %v603
    %708 = vmatprep.subr.mxu0 0.0
    %709 = vmatpush1.msra.mxu0 0.0
    %710 = vmatprep.subr.mxu0 0.0
    %711 = vmatpush1.msra.mxu0 0.0
    %712 = vmatprep.subr.mxu0 0.0
    %713 = vmatpush1.msra.mxu0 0.0
    %714 = vmatprep.subr.mxu0 0.0
    %715 = vmatpush1.msra.mxu0 0.0
    %716 = vmatprep.subr.mxu0 0.0
    %717 = vmatpush1.msra.mxu0 0.0
    %718 = vmatprep.subr.mxu0 0.0
    %719 = vmatpush1.msra.mxu0 0.0
    %720 = vmatprep.subr.mxu0 0.0
    %721 = vmatpush1.msra.mxu0 0.0
    %722 = vmatprep.subr.mxu0 0.0
    %723 = vmatpush1.msra.mxu0 0.0
    %724 = vmatprep.subr.mxu0 0.0
    %725 = vmatpush1.msra.mxu0 0.0
    %726 = vmatprep.subr.mxu0 0.0
    %727 = vmatpush1.msra.mxu0 0.0
    %728 = vmatprep.subr.mxu0 0.0
    %729 = vmatpush1.msra.mxu0 0.0
    %730 = vmatprep.subr.mxu0 0.0
    %731 = vmatpush1.msra.mxu0 0.0
    %732 = vmatprep.subr.mxu0 0.0
    %733 = vmatpush1.msra.mxu0 0.0
    %734 = vmatprep.subr.mxu0 0.0
    %735 = vmatpush1.msra.mxu0 0.0
    %736 = vmatprep.subr.mxu0 0.0
    %737 = vmatpush1.msra.mxu0 0.0
    %738 = vmatprep.subr.mxu0 0.0
    %739 = vmatpush1.msra.mxu0 0.0
    %740 = vmatprep.mubr.f32.mxu0 0.0
    %741 = vmatmul.mubr.f32.gmra.mrb[0].mxu0 %v534
    %v742 = vpop.f32.mrb[0].mxu0
    %v743 = vadd.f32 0.0, %v742
    %v744 = vpop.f32.mrb[0].mxu0
    %v745 = vadd.f32 0.0, %v744
    %746 = vdwg.mxu0
    %v747 = vadd.f32 %v537, %v672
    %v748 = vadd.f32 %v538, %v674
    %v749 = vadd.f32 %v539, %v743
    %v750 = vadd.f32 %v540, %v745
    %v751 = vxor.u32 %v747, 2147483648
    %v752 = vmul.f32 %v751, 1.442695
    %v753 = vpow.pop %v752
    %v754 = vadd.f32 %v753, 1.0
    %v755 = vrcp.pop %v754
    %v756 = vmul.f32 1.0, %v755
    %v757 = vxor.u32 %v748, 2147483648
    %v758 = vmul.f32 %v757, 1.442695
    %v759 = vpow.pop %v758
    %v760 = vadd.f32 %v759, 1.0
    %v761 = vrcp.pop %v760
    %v762 = vmul.f32 1.0, %v761
    %v763 = vtanh.pop %v749
    %v764 = vxor.u32 %v750, 2147483648
    %v765 = vmul.f32 %v764, 1.442695
    %v766 = vpow.pop %v765
    %v767 = vadd.f32 %v766, 1.0
    %v768 = vrcp.pop %v767
    %v769 = vmul.f32 1.0, %v768
    %v770 = vmul.f32 %v762, %v535
    %v771 = vmul.f32 %v756, %v763
    %v772 = vadd.f32 %v770, %v771
    %v773 = vtanh.pop %v772
    %v774 = vmul.f32 %v769, %v773
    %775 = vst [vmem:[#allocation2] sm:$0xff] %v774
    %776 = vst [vmem:[#allocation3] sm:$0xff] %v772
    %s777 = scalar_lea.vmem [#allocation9], 16
    %778 = vst [vmem:[%s777] sm:$0xff] %v774
    %v779 = vld [vmem:[#allocation2] sm:$0xff]
    %v780 = vld [vmem:[#allocation3] sm:$0xff]
    %s781 = scalar_lea.vmem [#allocation4], 96
    %v782 = vld [vmem:[%s781] sm:$0xff]
    %v783 = vld [vmem:[%s781 + $0x8] sm:$0xff]
    %v784 = vld [vmem:[%s781 + $0x10] sm:$0xff]
    %v785 = vld [vmem:[%s781 + $0x18] sm:$0xff]
    %v786 = vld [vmem:[#allocation7] sm:$0xff]
    %v787 = vld [vmem:[#allocation7 + $0x8] sm:$0xff]
    %v788 = vld [vmem:[#allocation7 + $0x10] sm:$0xff]
    %v789 = vld [vmem:[#allocation7 + $0x18] sm:$0xff]
    %v790 = vld [vmem:[#allocation7 + $0x20] sm:$0xff]
    %v791 = vld [vmem:[#allocation7 + $0x28] sm:$0xff]
    %v792 = vld [vmem:[#allocation7 + $0x30] sm:$0xff]
    %v793 = vld [vmem:[#allocation7 + $0x38] sm:$0xff]
    %v794 = vld [vmem:[#allocation7 + $0x40] sm:$0xff]
    %v795 = vld [vmem:[#allocation7 + $0x48] sm:$0xff]
    %v796 = vld [vmem:[#allocation7 + $0x50] sm:$0xff]
    %v797 = vld [vmem:[#allocation7 + $0x58] sm:$0xff]
    %v798 = vld [vmem:[#allocation7 + $0x60] sm:$0xff]
    %v799 = vld [vmem:[#allocation7 + $0x68] sm:$0xff]
    %v800 = vld [vmem:[#allocation7 + $0x70] sm:$0xff]
    %v801 = vld [vmem:[#allocation7 + $0x78] sm:$0xff]
    %v802 = vld [vmem:[#allocation7 + $0x80] sm:$0xff]
    %v803 = vld [vmem:[#allocation7 + $0x88] sm:$0xff]
    %v804 = vld [vmem:[#allocation7 + $0x90] sm:$0xff]
    %v805 = vld [vmem:[#allocation7 + $0x98] sm:$0xff]
    %v806 = vld [vmem:[#allocation7 + $0xa0] sm:$0xff]
    %v807 = vld [vmem:[#allocation7 + $0xa8] sm:$0xff]
    %v808 = vld [vmem:[#allocation7 + $0xb0] sm:$0xff]
    %v809 = vld [vmem:[#allocation7 + $0xb8] sm:$0xff]
    %v810 = vld [vmem:[#allocation7 + $0xc0] sm:$0xff]
    %v811 = vld [vmem:[#allocation7 + $0xc8] sm:$0xff]
    %v812 = vld [vmem:[#allocation7 + $0xd0] sm:$0xff]
    %v813 = vld [vmem:[#allocation7 + $0xd8] sm:$0xff]
    %v814 = vld [vmem:[#allocation7 + $0xe0] sm:$0xff]
    %v815 = vld [vmem:[#allocation7 + $0xe8] sm:$0xff]
    %v816 = vld [vmem:[#allocation7 + $0xf0] sm:$0xff]
    %v817 = vld [vmem:[#allocation7 + $0xf8] sm:$0xff]
    %v818 = vld [vmem:[#allocation7 + $0x100] sm:$0xff]
    %v819 = vld [vmem:[#allocation7 + $0x108] sm:$0xff]
    %v820 = vld [vmem:[#allocation7 + $0x110] sm:$0xff]
    %v821 = vld [vmem:[#allocation7 + $0x118] sm:$0xff]
    %v822 = vld [vmem:[#allocation7 + $0x120] sm:$0xff]
    %v823 = vld [vmem:[#allocation7 + $0x128] sm:$0xff]
    %v824 = vld [vmem:[#allocation7 + $0x130] sm:$0xff]
    %v825 = vld [vmem:[#allocation7 + $0x138] sm:$0xff]
    %v826 = vld [vmem:[#allocation7 + $0x140] sm:$0xff]
    %v827 = vld [vmem:[#allocation7 + $0x148] sm:$0xff]
    %v828 = vld [vmem:[#allocation7 + $0x150] sm:$0xff]
    %v829 = vld [vmem:[#allocation7 + $0x158] sm:$0xff]
    %v830 = vld [vmem:[#allocation7 + $0x160] sm:$0xff]
    %v831 = vld [vmem:[#allocation7 + $0x168] sm:$0xff]
    %v832 = vld [vmem:[#allocation7 + $0x170] sm:$0xff]
    %v833 = vld [vmem:[#allocation7 + $0x178] sm:$0xff]
    %v834 = vld [vmem:[#allocation7 + $0x180] sm:$0xff]
    %v835 = vld [vmem:[#allocation7 + $0x188] sm:$0xff]
    %v836 = vld [vmem:[#allocation7 + $0x190] sm:$0xff]
    %v837 = vld [vmem:[#allocation7 + $0x198] sm:$0xff]
    %v838 = vld [vmem:[#allocation7 + $0x1a0] sm:$0xff]
    %v839 = vld [vmem:[#allocation7 + $0x1a8] sm:$0xff]
    %v840 = vld [vmem:[#allocation7 + $0x1b0] sm:$0xff]
    %v841 = vld [vmem:[#allocation7 + $0x1b8] sm:$0xff]
    %v842 = vld [vmem:[#allocation7 + $0x1c0] sm:$0xff]
    %v843 = vld [vmem:[#allocation7 + $0x1c8] sm:$0xff]
    %v844 = vld [vmem:[#allocation7 + $0x1d0] sm:$0xff]
    %v845 = vld [vmem:[#allocation7 + $0x1d8] sm:$0xff]
    %v846 = vld [vmem:[#allocation7 + $0x1e0] sm:$0xff]
    %v847 = vld [vmem:[#allocation7 + $0x1e8] sm:$0xff]
    %v848 = vld [vmem:[#allocation7 + $0x1f0] sm:$0xff]
    %v849 = vld [vmem:[#allocation7 + $0x1f8] sm:$0xff]
    %850 = vmatprep.subr.mxu0 %v787
    %851 = vmatpush1.msra.mxu0 %v786
    %852 = vmatprep.subr.mxu0 %v791
    %853 = vmatpush1.msra.mxu0 %v790
    %854 = vmatprep.subr.mxu0 %v795
    %855 = vmatpush1.msra.mxu0 %v794
    %856 = vmatprep.subr.mxu0 %v799
    %857 = vmatpush1.msra.mxu0 %v798
    %858 = vmatprep.subr.mxu0 %v803
    %859 = vmatpush1.msra.mxu0 %v802
    %860 = vmatprep.subr.mxu0 %v807
    %861 = vmatpush1.msra.mxu0 %v806
    %862 = vmatprep.subr.mxu0 %v811
    %863 = vmatpush1.msra.mxu0 %v810
    %864 = vmatprep.subr.mxu0 %v815
    %865 = vmatpush1.msra.mxu0 %v814
    %866 = vmatprep.subr.mxu0 %v819
    %867 = vmatpush1.msra.mxu0 %v818
    %868 = vmatprep.subr.mxu0 %v823
    %869 = vmatpush1.msra.mxu0 %v822
    %870 = vmatprep.subr.mxu0 %v827
    %871 = vmatpush1.msra.mxu0 %v826
    %872 = vmatprep.subr.mxu0 %v831
    %873 = vmatpush1.msra.mxu0 %v830
    %874 = vmatprep.subr.mxu0 %v835
    %875 = vmatpush1.msra.mxu0 %v834
    %876 = vmatprep.subr.mxu0 %v839
    %877 = vmatpush1.msra.mxu0 %v838
    %878 = vmatprep.subr.mxu0 %v843
    %879 = vmatpush1.msra.mxu0 %v842
    %880 = vmatprep.subr.mxu0 %v847
    %881 = vmatpush1.msra.mxu0 %v846
    %882 = vmatprep.subr.mxu0 0.0
    %883 = vmatpush1.msra.mxu0 0.0
    %884 = vmatprep.subr.mxu0 0.0
    %885 = vmatpush1.msra.mxu0 0.0
    %886 = vmatprep.subr.mxu0 0.0
    %887 = vmatpush1.msra.mxu0 0.0
    %888 = vmatprep.subr.mxu0 0.0
    %889 = vmatpush1.msra.mxu0 0.0
    %890 = vmatprep.subr.mxu0 0.0
    %891 = vmatpush1.msra.mxu0 0.0
    %892 = vmatprep.subr.mxu0 0.0
    %893 = vmatpush1.msra.mxu0 0.0
    %894 = vmatprep.subr.mxu0 0.0
    %895 = vmatpush1.msra.mxu0 0.0
    %896 = vmatprep.subr.mxu0 0.0
    %897 = vmatpush1.msra.mxu0 0.0
    %898 = vmatprep.subr.mxu0 0.0
    %899 = vmatpush1.msra.mxu0 0.0
    %900 = vmatprep.subr.mxu0 0.0
    %901 = vmatpush1.msra.mxu0 0.0
    %902 = vmatprep.subr.mxu0 0.0
    %903 = vmatpush1.msra.mxu0 0.0
    %904 = vmatprep.subr.mxu0 0.0
    %905 = vmatpush1.msra.mxu0 0.0
    %906 = vmatprep.subr.mxu0 0.0
    %907 = vmatpush1.msra.mxu0 0.0
    %908 = vmatprep.subr.mxu0 0.0
    %909 = vmatpush1.msra.mxu0 0.0
    %910 = vmatprep.subr.mxu0 0.0
    %911 = vmatpush1.msra.mxu0 0.0
    %912 = vmatprep.subr.mxu0 0.0
    %913 = vmatpush1.msra.mxu0 0.0
    %914 = vmatprep.mubr.f32.mxu0 0.0
    %915 = vmatmul.mubr.f32.gmra.mrb[0].mxu0 %v779
    %v916 = vpop.f32.mrb[0].mxu0
    %v917 = vadd.f32 0.0, %v916
    %v918 = vpop.f32.mrb[0].mxu0
    %v919 = vadd.f32 0.0, %v918
    %920 = vdwg.mxu0
    %921 = vmatprep.subr.mxu0 %v789
    %922 = vmatpush1.msra.mxu0 %v788
    %923 = vmatprep.subr.mxu0 %v793
    %924 = vmatpush1.msra.mxu0 %v792
    %925 = vmatprep.subr.mxu0 %v797
    %926 = vmatpush1.msra.mxu0 %v796
    %927 = vmatprep.subr.mxu0 %v801
    %928 = vmatpush1.msra.mxu0 %v800
    %929 = vmatprep.subr.mxu0 %v805
    %930 = vmatpush1.msra.mxu0 %v804
    %931 = vmatprep.subr.mxu0 %v809
    %932 = vmatpush1.msra.mxu0 %v808
    %933 = vmatprep.subr.mxu0 %v813
    %934 = vmatpush1.msra.mxu0 %v812
    %935 = vmatprep.subr.mxu0 %v817
    %936 = vmatpush1.msra.mxu0 %v816
    %937 = vmatprep.subr.mxu0 %v821
    %938 = vmatpush1.msra.mxu0 %v820
    %939 = vmatprep.subr.mxu0 %v825
    %940 = vmatpush1.msra.mxu0 %v824
    %941 = vmatprep.subr.mxu0 %v829
    %942 = vmatpush1.msra.mxu0 %v828
    %943 = vmatprep.subr.mxu0 %v833
    %944 = vmatpush1.msra.mxu0 %v832
    %945 = vmatprep.subr.mxu0 %v837
    %946 = vmatpush1.msra.mxu0 %v836
    %947 = vmatprep.subr.mxu0 %v841
    %948 = vmatpush1.msra.mxu0 %v840
    %949 = vmatprep.subr.mxu0 %v845
    %950 = vmatpush1.msra.mxu0 %v844
    %951 = vmatprep.subr.mxu0 %v849
    %952 = vmatpush1.msra.mxu0 %v848
    %953 = vmatprep.subr.mxu0 0.0
    %954 = vmatpush1.msra.mxu0 0.0
    %955 = vmatprep.subr.mxu0 0.0
    %956 = vmatpush1.msra.mxu0 0.0
    %957 = vmatprep.subr.mxu0 0.0
    %958 = vmatpush1.msra.mxu0 0.0
    %959 = vmatprep.subr.mxu0 0.0
    %960 = vmatpush1.msra.mxu0 0.0
    %961 = vmatprep.subr.mxu0 0.0
    %962 = vmatpush1.msra.mxu0 0.0
    %963 = vmatprep.subr.mxu0 0.0
    %964 = vmatpush1.msra.mxu0 0.0
    %965 = vmatprep.subr.mxu0 0.0
    %966 = vmatpush1.msra.mxu0 0.0
    %967 = vmatprep.subr.mxu0 0.0
    %968 = vmatpush1.msra.mxu0 0.0
    %969 = vmatprep.subr.mxu0 0.0
    %970 = vmatpush1.msra.mxu0 0.0
    %971 = vmatprep.subr.mxu0 0.0
    %972 = vmatpush1.msra.mxu0 0.0
    %973 = vmatprep.subr.mxu0 0.0
    %974 = vmatpush1.msra.mxu0 0.0
    %975 = vmatprep.subr.mxu0 0.0
    %976 = vmatpush1.msra.mxu0 0.0
    %977 = vmatprep.subr.mxu0 0.0
    %978 = vmatpush1.msra.mxu0 0.0
    %979 = vmatprep.subr.mxu0 0.0
    %980 = vmatpush1.msra.mxu0 0.0
    %981 = vmatprep.subr.mxu0 0.0
    %982 = vmatpush1.msra.mxu0 0.0
    %983 = vmatprep.subr.mxu0 0.0
    %984 = vmatpush1.msra.mxu0 0.0
    %985 = vmatprep.mubr.f32.mxu0 0.0
    %986 = vmatmul.mubr.f32.gmra.mrb[0].mxu0 %v779
    %v987 = vpop.f32.mrb[0].mxu0
    %v988 = vadd.f32 0.0, %v987
    %v989 = vpop.f32.mrb[0].mxu0
    %v990 = vadd.f32 0.0, %v989
    %991 = vdwg.mxu0
    %v992 = vadd.f32 %v782, %v917
    %v993 = vadd.f32 %v783, %v919
    %v994 = vadd.f32 %v784, %v988
    %v995 = vadd.f32 %v785, %v990
    %v996 = vxor.u32 %v992, 2147483648
    %v997 = vmul.f32 %v996, 1.442695
    %v998 = vpow.pop %v997
    %v999 = vadd.f32 %v998, 1.0
    %v1000 = vrcp.pop %v999
    %v1001 = vmul.f32 1.0, %v1000
    %v1002 = vxor.u32 %v993, 2147483648
    %v1003 = vmul.f32 %v1002, 1.442695
    %v1004 = vpow.pop %v1003
    %v1005 = vadd.f32 %v1004, 1.0
    %v1006 = vrcp.pop %v1005
    %v1007 = vmul.f32 1.0, %v1006
    %v1008 = vtanh.pop %v994
    %v1009 = vxor.u32 %v995, 2147483648
    %v1010 = vmul.f32 %v1009, 1.442695
    %v1011 = vpow.pop %v1010
    %v1012 = vadd.f32 %v1011, 1.0
    %v1013 = vrcp.pop %v1012
    %v1014 = vmul.f32 1.0, %v1013
    %v1015 = vmul.f32 %v1007, %v780
    %v1016 = vmul.f32 %v1001, %v1008
    %v1017 = vadd.f32 %v1015, %v1016
    %v1018 = vtanh.pop %v1017
    %v1019 = vmul.f32 %v1014, %v1018
    %1020 = vst [vmem:[#allocation2] sm:$0xff] %v1019
    %1021 = vst [vmem:[#allocation3] sm:$0xff] %v1017
    %s1022 = scalar_lea.vmem [#allocation9], 24
    %1023 = vst [vmem:[%s1022] sm:$0xff] %v1019
    %v1024 = vld [vmem:[#allocation2] sm:$0xff]
    %v1025 = vld [vmem:[#allocation3] sm:$0xff]
    %s1026 = scalar_lea.vmem [#allocation4], 128
    %v1027 = vld [vmem:[%s1026] sm:$0xff]
    %v1028 = vld [vmem:[%s1026 + $0x8] sm:$0xff]
    %v1029 = vld [vmem:[%s1026 + $0x10] sm:$0xff]
    %v1030 = vld [vmem:[%s1026 + $0x18] sm:$0xff]
    %v1031 = vld [vmem:[#allocation7] sm:$0xff]
    %v1032 = vld [vmem:[#allocation7 + $0x8] sm:$0xff]
    %v1033 = vld [vmem:[#allocation7 + $0x10] sm:$0xff]
    %v1034 = vld [vmem:[#allocation7 + $0x18] sm:$0xff]
    %v1035 = vld [vmem:[#allocation7 + $0x20] sm:$0xff]
    %v1036 = vld [vmem:[#allocation7 + $0x28] sm:$0xff]
    %v1037 = vld [vmem:[#allocation7 + $0x30] sm:$0xff]
    %v1038 = vld [vmem:[#allocation7 + $0x38] sm:$0xff]
    %v1039 = vld [vmem:[#allocation7 + $0x40] sm:$0xff]
    %v1040 = vld [vmem:[#allocation7 + $0x48] sm:$0xff]
    %v1041 = vld [vmem:[#allocation7 + $0x50] sm:$0xff]
    %v1042 = vld [vmem:[#allocation7 + $0x58] sm:$0xff]
    %v1043 = vld [vmem:[#allocation7 + $0x60] sm:$0xff]
    %v1044 = vld [vmem:[#allocation7 + $0x68] sm:$0xff]
    %v1045 = vld [vmem:[#allocation7 + $0x70] sm:$0xff]
    %v1046 = vld [vmem:[#allocation7 + $0x78] sm:$0xff]
    %v1047 = vld [vmem:[#allocation7 + $0x80] sm:$0xff]
    %v1048 = vld [vmem:[#allocation7 + $0x88] sm:$0xff]
    %v1049 = vld [vmem:[#allocation7 + $0x90] sm:$0xff]
    %v1050 = vld [vmem:[#allocation7 + $0x98] sm:$0xff]
    %v1051 = vld [vmem:[#allocation7 + $0xa0] sm:$0xff]
    %v1052 = vld [vmem:[#allocation7 + $0xa8] sm:$0xff]
    %v1053 = vld [vmem:[#allocation7 + $0xb0] sm:$0xff]
    %v1054 = vld [vmem:[#allocation7 + $0xb8] sm:$0xff]
    %v1055 = vld [vmem:[#allocation7 + $0xc0] sm:$0xff]
    %v1056 = vld [vmem:[#allocation7 + $0xc8] sm:$0xff]
    %v1057 = vld [vmem:[#allocation7 + $0xd0] sm:$0xff]
    %v1058 = vld [vmem:[#allocation7 + $0xd8] sm:$0xff]
    %v1059 = vld [vmem:[#allocation7 + $0xe0] sm:$0xff]
    %v1060 = vld [vmem:[#allocation7 + $0xe8] sm:$0xff]
    %v1061 = vld [vmem:[#allocation7 + $0xf0] sm:$0xff]
    %v1062 = vld [vmem:[#allocation7 + $0xf8] sm:$0xff]
    %v1063 = vld [vmem:[#allocation7 + $0x100] sm:$0xff]
    %v1064 = vld [vmem:[#allocation7 + $0x108] sm:$0xff]
    %v1065 = vld [vmem:[#allocation7 + $0x110] sm:$0xff]
    %v1066 = vld [vmem:[#allocation7 + $0x118] sm:$0xff]
    %v1067 = vld [vmem:[#allocation7 + $0x120] sm:$0xff]
    %v1068 = vld [vmem:[#allocation7 + $0x128] sm:$0xff]
    %v1069 = vld [vmem:[#allocation7 + $0x130] sm:$0xff]
    %v1070 = vld [vmem:[#allocation7 + $0x138] sm:$0xff]
    %v1071 = vld [vmem:[#allocation7 + $0x140] sm:$0xff]
    %v1072 = vld [vmem:[#allocation7 + $0x148] sm:$0xff]
    %v1073 = vld [vmem:[#allocation7 + $0x150] sm:$0xff]
    %v1074 = vld [vmem:[#allocation7 + $0x158] sm:$0xff]
    %v1075 = vld [vmem:[#allocation7 + $0x160] sm:$0xff]
    %v1076 = vld [vmem:[#allocation7 + $0x168] sm:$0xff]
    %v1077 = vld [vmem:[#allocation7 + $0x170] sm:$0xff]
    %v1078 = vld [vmem:[#allocation7 + $0x178] sm:$0xff]
    %v1079 = vld [vmem:[#allocation7 + $0x180] sm:$0xff]
    %v1080 = vld [vmem:[#allocation7 + $0x188] sm:$0xff]
    %v1081 = vld [vmem:[#allocation7 + $0x190] sm:$0xff]
    %v1082 = vld [vmem:[#allocation7 + $0x198] sm:$0xff]
    %v1083 = vld [vmem:[#allocation7 + $0x1a0] sm:$0xff]
    %v1084 = vld [vmem:[#allocation7 + $0x1a8] sm:$0xff]
    %v1085 = vld [vmem:[#allocation7 + $0x1b0] sm:$0xff]
    %v1086 = vld [vmem:[#allocation7 + $0x1b8] sm:$0xff]
    %v1087 = vld [vmem:[#allocation7 + $0x1c0] sm:$0xff]
    %v1088 = vld [vmem:[#allocation7 + $0x1c8] sm:$0xff]
    %v1089 = vld [vmem:[#allocation7 + $0x1d0] sm:$0xff]
    %v1090 = vld [vmem:[#allocation7 + $0x1d8] sm:$0xff]
    %v1091 = vld [vmem:[#allocation7 + $0x1e0] sm:$0xff]
    %v1092 = vld [vmem:[#allocation7 + $0x1e8] sm:$0xff]
    %v1093 = vld [vmem:[#allocation7 + $0x1f0] sm:$0xff]
    %v1094 = vld [vmem:[#allocation7 + $0x1f8] sm:$0xff]
    %1095 = vmatprep.subr.mxu0 %v1032
    %1096 = vmatpush1.msra.mxu0 %v1031
    %1097 = vmatprep.subr.mxu0 %v1036
    %1098 = vmatpush1.msra.mxu0 %v1035
    %1099 = vmatprep.subr.mxu0 %v1040
    %1100 = vmatpush1.msra.mxu0 %v1039
    %1101 = vmatprep.subr.mxu0 %v1044
    %1102 = vmatpush1.msra.mxu0 %v1043
    %1103 = vmatprep.subr.mxu0 %v1048
    %1104 = vmatpush1.msra.mxu0 %v1047
    %1105 = vmatprep.subr.mxu0 %v1052
    %1106 = vmatpush1.msra.mxu0 %v1051
    %1107 = vmatprep.subr.mxu0 %v1056
    %1108 = vmatpush1.msra.mxu0 %v1055
    %1109 = vmatprep.subr.mxu0 %v1060
    %1110 = vmatpush1.msra.mxu0 %v1059
    %1111 = vmatprep.subr.mxu0 %v1064
    %1112 = vmatpush1.msra.mxu0 %v1063
    %1113 = vmatprep.subr.mxu0 %v1068
    %1114 = vmatpush1.msra.mxu0 %v1067
    %1115 = vmatprep.subr.mxu0 %v1072
    %1116 = vmatpush1.msra.mxu0 %v1071
    %1117 = vmatprep.subr.mxu0 %v1076
    %1118 = vmatpush1.msra.mxu0 %v1075
    %1119 = vmatprep.subr.mxu0 %v1080
    %1120 = vmatpush1.msra.mxu0 %v1079
    %1121 = vmatprep.subr.mxu0 %v1084
    %1122 = vmatpush1.msra.mxu0 %v1083
    %1123 = vmatprep.subr.mxu0 %v1088
    %1124 = vmatpush1.msra.mxu0 %v1087
    %1125 = vmatprep.subr.mxu0 %v1092
    %1126 = vmatpush1.msra.mxu0 %v1091
    %1127 = vmatprep.subr.mxu0 0.0
    %1128 = vmatpush1.msra.mxu0 0.0
    %1129 = vmatprep.subr.mxu0 0.0
    %1130 = vmatpush1.msra.mxu0 0.0
    %1131 = vmatprep.subr.mxu0 0.0
    %1132 = vmatpush1.msra.mxu0 0.0
    %1133 = vmatprep.subr.mxu0 0.0
    %1134 = vmatpush1.msra.mxu0 0.0
    %1135 = vmatprep.subr.mxu0 0.0
    %1136 = vmatpush1.msra.mxu0 0.0
    %1137 = vmatprep.subr.mxu0 0.0
    %1138 = vmatpush1.msra.mxu0 0.0
    %1139 = vmatprep.subr.mxu0 0.0
    %1140 = vmatpush1.msra.mxu0 0.0
    %1141 = vmatprep.subr.mxu0 0.0
    %1142 = vmatpush1.msra.mxu0 0.0
    %1143 = vmatprep.subr.mxu0 0.0
    %1144 = vmatpush1.msra.mxu0 0.0
    %1145 = vmatprep.subr.mxu0 0.0
    %1146 = vmatpush1.msra.mxu0 0.0
    %1147 = vmatprep.subr.mxu0 0.0
    %1148 = vmatpush1.msra.mxu0 0.0
    %1149 = vmatprep.subr.mxu0 0.0
    %1150 = vmatpush1.msra.mxu0 0.0
    %1151 = vmatprep.subr.mxu0 0.0
    %1152 = vmatpush1.msra.mxu0 0.0
    %1153 = vmatprep.subr.mxu0 0.0
    %1154 = vmatpush1.msra.mxu0 0.0
    %1155 = vmatprep.subr.mxu0 0.0
    %1156 = vmatpush1.msra.mxu0 0.0
    %1157 = vmatprep.subr.mxu0 0.0
    %1158 = vmatpush1.msra.mxu0 0.0
    %1159 = vmatprep.mubr.f32.mxu0 0.0
    %1160 = vmatmul.mubr.f32.gmra.mrb[0].mxu0 %v1024
    %v1161 = vpop.f32.mrb[0].mxu0
    %v1162 = vadd.f32 0.0, %v1161
    %v1163 = vpop.f32.mrb[0].mxu0
    %v1164 = vadd.f32 0.0, %v1163
    %1165 = vdwg.mxu0
    %1166 = vmatprep.subr.mxu0 %v1034
    %1167 = vmatpush1.msra.mxu0 %v1033
    %1168 = vmatprep.subr.mxu0 %v1038
    %1169 = vmatpush1.msra.mxu0 %v1037
    %1170 = vmatprep.subr.mxu0 %v1042
    %1171 = vmatpush1.msra.mxu0 %v1041
    %1172 = vmatprep.subr.mxu0 %v1046
    %1173 = vmatpush1.msra.mxu0 %v1045
    %1174 = vmatprep.subr.mxu0 %v1050
    %1175 = vmatpush1.msra.mxu0 %v1049
    %1176 = vmatprep.subr.mxu0 %v1054
    %1177 = vmatpush1.msra.mxu0 %v1053
    %1178 = vmatprep.subr.mxu0 %v1058
    %1179 = vmatpush1.msra.mxu0 %v1057
    %1180 = vmatprep.subr.mxu0 %v1062
    %1181 = vmatpush1.msra.mxu0 %v1061
    %1182 = vmatprep.subr.mxu0 %v1066
    %1183 = vmatpush1.msra.mxu0 %v1065
    %1184 = vmatprep.subr.mxu0 %v1070
    %1185 = vmatpush1.msra.mxu0 %v1069
    %1186 = vmatprep.subr.mxu0 %v1074
    %1187 = vmatpush1.msra.mxu0 %v1073
    %1188 = vmatprep.subr.mxu0 %v1078
    %1189 = vmatpush1.msra.mxu0 %v1077
    %1190 = vmatprep.subr.mxu0 %v1082
    %1191 = vmatpush1.msra.mxu0 %v1081
    %1192 = vmatprep.subr.mxu0 %v1086
    %1193 = vmatpush1.msra.mxu0 %v1085
    %1194 = vmatprep.subr.mxu0 %v1090
    %1195 = vmatpush1.msra.mxu0 %v1089
    %1196 = vmatprep.subr.mxu0 %v1094
    %1197 = vmatpush1.msra.mxu0 %v1093
    %1198 = vmatprep.subr.mxu0 0.0
    %1199 = vmatpush1.msra.mxu0 0.0
    %1200 = vmatprep.subr.mxu0 0.0
    %1201 = vmatpush1.msra.mxu0 0.0
    %1202 = vmatprep.subr.mxu0 0.0
    %1203 = vmatpush1.msra.mxu0 0.0
    %1204 = vmatprep.subr.mxu0 0.0
    %1205 = vmatpush1.msra.mxu0 0.0
    %1206 = vmatprep.subr.mxu0 0.0
    %1207 = vmatpush1.msra.mxu0 0.0
    %1208 = vmatprep.subr.mxu0 0.0
    %1209 = vmatpush1.msra.mxu0 0.0
    %1210 = vmatprep.subr.mxu0 0.0
    %1211 = vmatpush1.msra.mxu0 0.0
    %1212 = vmatprep.subr.mxu0 0.0
    %1213 = vmatpush1.msra.mxu0 0.0
    %1214 = vmatprep.subr.mxu0 0.0
    %1215 = vmatpush1.msra.mxu0 0.0
    %1216 = vmatprep.subr.mxu0 0.0
    %1217 = vmatpush1.msra.mxu0 0.0
    %1218 = vmatprep.subr.mxu0 0.0
    %1219 = vmatpush1.msra.mxu0 0.0
    %1220 = vmatprep.subr.mxu0 0.0
    %1221 = vmatpush1.msra.mxu0 0.0
    %1222 = vmatprep.subr.mxu0 0.0
    %1223 = vmatpush1.msra.mxu0 0.0
    %1224 = vmatprep.subr.mxu0 0.0
    %1225 = vmatpush1.msra.mxu0 0.0
    %1226 = vmatprep.subr.mxu0 0.0
    %1227 = vmatpush1.msra.mxu0 0.0
    %1228 = vmatprep.subr.mxu0 0.0
    %1229 = vmatpush1.msra.mxu0 0.0
    %1230 = vmatprep.mubr.f32.mxu0 0.0
    %1231 = vmatmul.mubr.f32.gmra.mrb[0].mxu0 %v1024
    %v1232 = vpop.f32.mrb[0].mxu0
    %v1233 = vadd.f32 0.0, %v1232
    %v1234 = vpop.f32.mrb[0].mxu0
    %v1235 = vadd.f32 0.0, %v1234
    %1236 = vdwg.mxu0
    %v1237 = vadd.f32 %v1027, %v1162
    %v1238 = vadd.f32 %v1028, %v1164
    %v1239 = vadd.f32 %v1029, %v1233
    %v1240 = vadd.f32 %v1030, %v1235
    %v1241 = vxor.u32 %v1237, 2147483648
    %v1242 = vmul.f32 %v1241, 1.442695
    %v1243 = vpow.pop %v1242
    %v1244 = vadd.f32 %v1243, 1.0
    %v1245 = vrcp.pop %v1244
    %v1246 = vmul.f32 1.0, %v1245
    %v1247 = vxor.u32 %v1238, 2147483648
    %v1248 = vmul.f32 %v1247, 1.442695
    %v1249 = vpow.pop %v1248
    %v1250 = vadd.f32 %v1249, 1.0
    %v1251 = vrcp.pop %v1250
    %v1252 = vmul.f32 1.0, %v1251
    %v1253 = vtanh.pop %v1239
    %v1254 = vxor.u32 %v1240, 2147483648
    %v1255 = vmul.f32 %v1254, 1.442695
    %v1256 = vpow.pop %v1255
    %v1257 = vadd.f32 %v1256, 1.0
    %v1258 = vrcp.pop %v1257
    %v1259 = vmul.f32 1.0, %v1258
    %v1260 = vmul.f32 %v1252, %v1025
    %v1261 = vmul.f32 %v1246, %v1253
    %v1262 = vadd.f32 %v1260, %v1261
    %v1263 = vtanh.pop %v1262
    %v1264 = vmul.f32 %v1259, %v1263
    %1265 = vst [vmem:[#allocation2] sm:$0xff] %v1264
    %1266 = vst [vmem:[#allocation3] sm:$0xff] %v1262
    %s1267 = scalar_lea.vmem [#allocation9], 32
    %1268 = vst [vmem:[%s1267] sm:$0xff] %v1264
    %v1269 = vld [vmem:[#allocation2] sm:$0xff]
    %v1270 = vld [vmem:[#allocation3] sm:$0xff]
    %s1271 = scalar_lea.vmem [#allocation4], 160
    %v1272 = vld [vmem:[%s1271] sm:$0xff]
    %v1273 = vld [vmem:[%s1271 + $0x8] sm:$0xff]
    %v1274 = vld [vmem:[%s1271 + $0x10] sm:$0xff]
    %v1275 = vld [vmem:[%s1271 + $0x18] sm:$0xff]
    %v1276 = vld [vmem:[#allocation7] sm:$0xff]
    %v1277 = vld [vmem:[#allocation7 + $0x8] sm:$0xff]
    %v1278 = vld [vmem:[#allocation7 + $0x10] sm:$0xff]
    %v1279 = vld [vmem:[#allocation7 + $0x18] sm:$0xff]
    %v1280 = vld [vmem:[#allocation7 + $0x20] sm:$0xff]
    %v1281 = vld [vmem:[#allocation7 + $0x28] sm:$0xff]
    %v1282 = vld [vmem:[#allocation7 + $0x30] sm:$0xff]
    %v1283 = vld [vmem:[#allocation7 + $0x38] sm:$0xff]
    %v1284 = vld [vmem:[#allocation7 + $0x40] sm:$0xff]
    %v1285 = vld [vmem:[#allocation7 + $0x48] sm:$0xff]
    %v1286 = vld [vmem:[#allocation7 + $0x50] sm:$0xff]
    %v1287 = vld [vmem:[#allocation7 + $0x58] sm:$0xff]
    %v1288 = vld [vmem:[#allocation7 + $0x60] sm:$0xff]
    %v1289 = vld [vmem:[#allocation7 + $0x68] sm:$0xff]
    %v1290 = vld [vmem:[#allocation7 + $0x70] sm:$0xff]
    %v1291 = vld [vmem:[#allocation7 + $0x78] sm:$0xff]
    %v1292 = vld [vmem:[#allocation7 + $0x80] sm:$0xff]
    %v1293 = vld [vmem:[#allocation7 + $0x88] sm:$0xff]
    %v1294 = vld [vmem:[#allocation7 + $0x90] sm:$0xff]
    %v1295 = vld [vmem:[#allocation7 + $0x98] sm:$0xff]
    %v1296 = vld [vmem:[#allocation7 + $0xa0] sm:$0xff]
    %v1297 = vld [vmem:[#allocation7 + $0xa8] sm:$0xff]
    %v1298 = vld [vmem:[#allocation7 + $0xb0] sm:$0xff]
    %v1299 = vld [vmem:[#allocation7 + $0xb8] sm:$0xff]
    %v1300 = vld [vmem:[#allocation7 + $0xc0] sm:$0xff]
    %v1301 = vld [vmem:[#allocation7 + $0xc8] sm:$0xff]
    %v1302 = vld [vmem:[#allocation7 + $0xd0] sm:$0xff]
    %v1303 = vld [vmem:[#allocation7 + $0xd8] sm:$0xff]
    %v1304 = vld [vmem:[#allocation7 + $0xe0] sm:$0xff]
    %v1305 = vld [vmem:[#allocation7 + $0xe8] sm:$0xff]
    %v1306 = vld [vmem:[#allocation7 + $0xf0] sm:$0xff]
    %v1307 = vld [vmem:[#allocation7 + $0xf8] sm:$0xff]
    %v1308 = vld [vmem:[#allocation7 + $0x100] sm:$0xff]
    %v1309 = vld [vmem:[#allocation7 + $0x108] sm:$0xff]
    %v1310 = vld [vmem:[#allocation7 + $0x110] sm:$0xff]
    %v1311 = vld [vmem:[#allocation7 + $0x118] sm:$0xff]
    %v1312 = vld [vmem:[#allocation7 + $0x120] sm:$0xff]
    %v1313 = vld [vmem:[#allocation7 + $0x128] sm:$0xff]
    %v1314 = vld [vmem:[#allocation7 + $0x130] sm:$0xff]
    %v1315 = vld [vmem:[#allocation7 + $0x138] sm:$0xff]
    %v1316 = vld [vmem:[#allocation7 + $0x140] sm:$0xff]
    %v1317 = vld [vmem:[#allocation7 + $0x148] sm:$0xff]
    %v1318 = vld [vmem:[#allocation7 + $0x150] sm:$0xff]
    %v1319 = vld [vmem:[#allocation7 + $0x158] sm:$0xff]
    %v1320 = vld [vmem:[#allocation7 + $0x160] sm:$0xff]
    %v1321 = vld [vmem:[#allocation7 + $0x168] sm:$0xff]
    %v1322 = vld [vmem:[#allocation7 + $0x170] sm:$0xff]
    %v1323 = vld [vmem:[#allocation7 + $0x178] sm:$0xff]
    %v1324 = vld [vmem:[#allocation7 + $0x180] sm:$0xff]
    %v1325 = vld [vmem:[#allocation7 + $0x188] sm:$0xff]
    %v1326 = vld [vmem:[#allocation7 + $0x190] sm:$0xff]
    %v1327 = vld [vmem:[#allocation7 + $0x198] sm:$0xff]
    %v1328 = vld [vmem:[#allocation7 + $0x1a0] sm:$0xff]
    %v1329 = vld [vmem:[#allocation7 + $0x1a8] sm:$0xff]
    %v1330 = vld [vmem:[#allocation7 + $0x1b0] sm:$0xff]
    %v1331 = vld [vmem:[#allocation7 + $0x1b8] sm:$0xff]
    %v1332 = vld [vmem:[#allocation7 + $0x1c0] sm:$0xff]
    %v1333 = vld [vmem:[#allocation7 + $0x1c8] sm:$0xff]
    %v1334 = vld [vmem:[#allocation7 + $0x1d0] sm:$0xff]
    %v1335 = vld [vmem:[#allocation7 + $0x1d8] sm:$0xff]
    %v1336 = vld [vmem:[#allocation7 + $0x1e0] sm:$0xff]
    %v1337 = vld [vmem:[#allocation7 + $0x1e8] sm:$0xff]
    %v1338 = vld [vmem:[#allocation7 + $0x1f0] sm:$0xff]
    %v1339 = vld [vmem:[#allocation7 + $0x1f8] sm:$0xff]
    %1340 = vmatprep.subr.mxu0 %v1277
    %1341 = vmatpush1.msra.mxu0 %v1276
    %1342 = vmatprep.subr.mxu0 %v1281
    %1343 = vmatpush1.msra.mxu0 %v1280
    %1344 = vmatprep.subr.mxu0 %v1285
    %1345 = vmatpush1.msra.mxu0 %v1284
    %1346 = vmatprep.subr.mxu0 %v1289
    %1347 = vmatpush1.msra.mxu0 %v1288
    %1348 = vmatprep.subr.mxu0 %v1293
    %1349 = vmatpush1.msra.mxu0 %v1292
    %1350 = vmatprep.subr.mxu0 %v1297
    %1351 = vmatpush1.msra.mxu0 %v1296
    %1352 = vmatprep.subr.mxu0 %v1301
    %1353 = vmatpush1.msra.mxu0 %v1300
    %1354 = vmatprep.subr.mxu0 %v1305
    %1355 = vmatpush1.msra.mxu0 %v1304
    %1356 = vmatprep.subr.mxu0 %v1309
    %1357 = vmatpush1.msra.mxu0 %v1308
    %1358 = vmatprep.subr.mxu0 %v1313
    %1359 = vmatpush1.msra.mxu0 %v1312
    %1360 = vmatprep.subr.mxu0 %v1317
    %1361 = vmatpush1.msra.mxu0 %v1316
    %1362 = vmatprep.subr.mxu0 %v1321
    %1363 = vmatpush1.msra.mxu0 %v1320
    %1364 = vmatprep.subr.mxu0 %v1325
    %1365 = vmatpush1.msra.mxu0 %v1324
    %1366 = vmatprep.subr.mxu0 %v1329
    %1367 = vmatpush1.msra.mxu0 %v1328
    %1368 = vmatprep.subr.mxu0 %v1333
    %1369 = vmatpush1.msra.mxu0 %v1332
    %1370 = vmatprep.subr.mxu0 %v1337
    %1371 = vmatpush1.msra.mxu0 %v1336
    %1372 = vmatprep.subr.mxu0 0.0
    %1373 = vmatpush1.msra.mxu0 0.0
    %1374 = vmatprep.subr.mxu0 0.0
    %1375 = vmatpush1.msra.mxu0 0.0
    %1376 = vmatprep.subr.mxu0 0.0
    %1377 = vmatpush1.msra.mxu0 0.0
    %1378 = vmatprep.subr.mxu0 0.0
    %1379 = vmatpush1.msra.mxu0 0.0
    %1380 = vmatprep.subr.mxu0 0.0
    %1381 = vmatpush1.msra.mxu0 0.0
    %1382 = vmatprep.subr.mxu0 0.0
    %1383 = vmatpush1.msra.mxu0 0.0
    %1384 = vmatprep.subr.mxu0 0.0
    %1385 = vmatpush1.msra.mxu0 0.0
    %1386 = vmatprep.subr.mxu0 0.0
    %1387 = vmatpush1.msra.mxu0 0.0
    %1388 = vmatprep.subr.mxu0 0.0
    %1389 = vmatpush1.msra.mxu0 0.0
    %1390 = vmatprep.subr.mxu0 0.0
    %1391 = vmatpush1.msra.mxu0 0.0
    %1392 = vmatprep.subr.mxu0 0.0
    %1393 = vmatpush1.msra.mxu0 0.0
    %1394 = vmatprep.subr.mxu0 0.0
    %1395 = vmatpush1.msra.mxu0 0.0
    %1396 = vmatprep.subr.mxu0 0.0
    %1397 = vmatpush1.msra.mxu0 0.0
    %1398 = vmatprep.subr.mxu0 0.0
    %1399 = vmatpush1.msra.mxu0 0.0
    %1400 = vmatprep.subr.mxu0 0.0
    %1401 = vmatpush1.msra.mxu0 0.0
    %1402 = vmatprep.subr.mxu0 0.0
    %1403 = vmatpush1.msra.mxu0 0.0
    %1404 = vmatprep.mubr.f32.mxu0 0.0
    %1405 = vmatmul.mubr.f32.gmra.mrb[0].mxu0 %v1269
    %v1406 = vpop.f32.mrb[0].mxu0
    %v1407 = vadd.f32 0.0, %v1406
    %v1408 = vpop.f32.mrb[0].mxu0
    %v1409 = vadd.f32 0.0, %v1408
    %1410 = vdwg.mxu0
    %1411 = vmatprep.subr.mxu0 %v1279
    %1412 = vmatpush1.msra.mxu0 %v1278
    %1413 = vmatprep.subr.mxu0 %v1283
    %1414 = vmatpush1.msra.mxu0 %v1282
    %1415 = vmatprep.subr.mxu0 %v1287
    %1416 = vmatpush1.msra.mxu0 %v1286
    %1417 = vmatprep.subr.mxu0 %v1291
    %1418 = vmatpush1.msra.mxu0 %v1290
    %1419 = vmatprep.subr.mxu0 %v1295
    %1420 = vmatpush1.msra.mxu0 %v1294
    %1421 = vmatprep.subr.mxu0 %v1299
    %1422 = vmatpush1.msra.mxu0 %v1298
    %1423 = vmatprep.subr.mxu0 %v1303
    %1424 = vmatpush1.msra.mxu0 %v1302
    %1425 = vmatprep.subr.mxu0 %v1307
    %1426 = vmatpush1.msra.mxu0 %v1306
    %1427 = vmatprep.subr.mxu0 %v1311
    %1428 = vmatpush1.msra.mxu0 %v1310
    %1429 = vmatprep.subr.mxu0 %v1315
    %1430 = vmatpush1.msra.mxu0 %v1314
    %1431 = vmatprep.subr.mxu0 %v1319
    %1432 = vmatpush1.msra.mxu0 %v1318
    %1433 = vmatprep.subr.mxu0 %v1323
    %1434 = vmatpush1.msra.mxu0 %v1322
    %1435 = vmatprep.subr.mxu0 %v1327
    %1436 = vmatpush1.msra.mxu0 %v1326
    %1437 = vmatprep.subr.mxu0 %v1331
    %1438 = vmatpush1.msra.mxu0 %v1330
    %1439 = vmatprep.subr.mxu0 %v1335
    %1440 = vmatpush1.msra.mxu0 %v1334
    %1441 = vmatprep.subr.mxu0 %v1339
    %1442 = vmatpush1.msra.mxu0 %v1338
    %1443 = vmatprep.subr.mxu0 0.0
    %1444 = vmatpush1.msra.mxu0 0.0
    %1445 = vmatprep.subr.mxu0 0.0
    %1446 = vmatpush1.msra.mxu0 0.0
    %1447 = vmatprep.subr.mxu0 0.0
    %1448 = vmatpush1.msra.mxu0 0.0
    %1449 = vmatprep.subr.mxu0 0.0
    %1450 = vmatpush1.msra.mxu0 0.0
    %1451 = vmatprep.subr.mxu0 0.0
    %1452 = vmatpush1.msra.mxu0 0.0
    %1453 = vmatprep.subr.mxu0 0.0
    %1454 = vmatpush1.msra.mxu0 0.0
    %1455 = vmatprep.subr.mxu0 0.0
    %1456 = vmatpush1.msra.mxu0 0.0
    %1457 = vmatprep.subr.mxu0 0.0
    %1458 = vmatpush1.msra.mxu0 0.0
    %1459 = vmatprep.subr.mxu0 0.0
    %1460 = vmatpush1.msra.mxu0 0.0
    %1461 = vmatprep.subr.mxu0 0.0
    %1462 = vmatpush1.msra.mxu0 0.0
    %1463 = vmatprep.subr.mxu0 0.0
    %1464 = vmatpush1.msra.mxu0 0.0
    %1465 = vmatprep.subr.mxu0 0.0
    %1466 = vmatpush1.msra.mxu0 0.0
    %1467 = vmatprep.subr.mxu0 0.0
    %1468 = vmatpush1.msra.mxu0 0.0
    %1469 = vmatprep.subr.mxu0 0.0
    %1470 = vmatpush1.msra.mxu0 0.0
    %1471 = vmatprep.subr.mxu0 0.0
    %1472 = vmatpush1.msra.mxu0 0.0
    %1473 = vmatprep.subr.mxu0 0.0
    %1474 = vmatpush1.msra.mxu0 0.0
    %1475 = vmatprep.mubr.f32.mxu0 0.0
    %1476 = vmatmul.mubr.f32.gmra.mrb[0].mxu0 %v1269
    %v1477 = vpop.f32.mrb[0].mxu0
    %v1478 = vadd.f32 0.0, %v1477
    %v1479 = vpop.f32.mrb[0].mxu0
    %v1480 = vadd.f32 0.0, %v1479
    %1481 = vdwg.mxu0
    %v1482 = vadd.f32 %v1272, %v1407
    %v1483 = vadd.f32 %v1273, %v1409
    %v1484 = vadd.f32 %v1274, %v1478
    %v1485 = vadd.f32 %v1275, %v1480
    %v1486 = vxor.u32 %v1482, 2147483648
    %v1487 = vmul.f32 %v1486, 1.442695
    %v1488 = vpow.pop %v1487
    %v1489 = vadd.f32 %v1488, 1.0
    %v1490 = vrcp.pop %v1489
    %v1491 = vmul.f32 1.0, %v1490
    %v1492 = vxor.u32 %v1483, 2147483648
    %v1493 = vmul.f32 %v1492, 1.442695
    %v1494 = vpow.pop %v1493
    %v1495 = vadd.f32 %v1494, 1.0
    %v1496 = vrcp.pop %v1495
    %v1497 = vmul.f32 1.0, %v1496
    %v1498 = vtanh.pop %v1484
    %v1499 = vxor.u32 %v1485, 2147483648
    %v1500 = vmul.f32 %v1499, 1.442695
    %v1501 = vpow.pop %v1500
    %v1502 = vadd.f32 %v1501, 1.0
    %v1503 = vrcp.pop %v1502
    %v1504 = vmul.f32 1.0, %v1503
    %v1505 = vmul.f32 %v1497, %v1270
    %v1506 = vmul.f32 %v1491, %v1498
    %v1507 = vadd.f32 %v1505, %v1506
    %v1508 = vtanh.pop %v1507
    %v1509 = vmul.f32 %v1504, %v1508
    %1510 = vst [vmem:[#allocation2] sm:$0xff] %v1509
    %1511 = vst [vmem:[#allocation3] sm:$0xff] %v1507
    %s1512 = scalar_lea.vmem [#allocation9], 40
    %1513 = vst [vmem:[%s1512] sm:$0xff] %v1509
    %v1514 = vld [vmem:[#allocation2] sm:$0xff]
    %v1515 = vld [vmem:[#allocation3] sm:$0xff]
    %s1516 = scalar_lea.vmem [#allocation4], 192
    %v1517 = vld [vmem:[%s1516] sm:$0xff]
    %v1518 = vld [vmem:[%s1516 + $0x8] sm:$0xff]
    %v1519 = vld [vmem:[%s1516 + $0x10] sm:$0xff]
    %v1520 = vld [vmem:[%s1516 + $0x18] sm:$0xff]
    %v1521 = vld [vmem:[#allocation7] sm:$0xff]
    %v1522 = vld [vmem:[#allocation7 + $0x8] sm:$0xff]
    %v1523 = vld [vmem:[#allocation7 + $0x10] sm:$0xff]
    %v1524 = vld [vmem:[#allocation7 + $0x18] sm:$0xff]
    %v1525 = vld [vmem:[#allocation7 + $0x20] sm:$0xff]
    %v1526 = vld [vmem:[#allocation7 + $0x28] sm:$0xff]
    %v1527 = vld [vmem:[#allocation7 + $0x30] sm:$0xff]
    %v1528 = vld [vmem:[#allocation7 + $0x38] sm:$0xff]
    %v1529 = vld [vmem:[#allocation7 + $0x40] sm:$0xff]
    %v1530 = vld [vmem:[#allocation7 + $0x48] sm:$0xff]
    %v1531 = vld [vmem:[#allocation7 + $0x50] sm:$0xff]
    %v1532 = vld [vmem:[#allocation7 + $0x58] sm:$0xff]
    %v1533 = vld [vmem:[#allocation7 + $0x60] sm:$0xff]
    %v1534 = vld [vmem:[#allocation7 + $0x68] sm:$0xff]
    %v1535 = vld [vmem:[#allocation7 + $0x70] sm:$0xff]
    %v1536 = vld [vmem:[#allocation7 + $0x78] sm:$0xff]
    %v1537 = vld [vmem:[#allocation7 + $0x80] sm:$0xff]
    %v1538 = vld [vmem:[#allocation7 + $0x88] sm:$0xff]
    %v1539 = vld [vmem:[#allocation7 + $0x90] sm:$0xff]
    %v1540 = vld [vmem:[#allocation7 + $0x98] sm:$0xff]
    %v1541 = vld [vmem:[#allocation7 + $0xa0] sm:$0xff]
    %v1542 = vld [vmem:[#allocation7 + $0xa8] sm:$0xff]
    %v1543 = vld [vmem:[#allocation7 + $0xb0] sm:$0xff]
    %v1544 = vld [vmem:[#allocation7 + $0xb8] sm:$0xff]
    %v1545 = vld [vmem:[#allocation7 + $0xc0] sm:$0xff]
    %v1546 = vld [vmem:[#allocation7 + $0xc8] sm:$0xff]
    %v1547 = vld [vmem:[#allocation7 + $0xd0] sm:$0xff]
    %v1548 = vld [vmem:[#allocation7 + $0xd8] sm:$0xff]
    %v1549 = vld [vmem:[#allocation7 + $0xe0] sm:$0xff]
    %v1550 = vld [vmem:[#allocation7 + $0xe8] sm:$0xff]
    %v1551 = vld [vmem:[#allocation7 + $0xf0] sm:$0xff]
    %v1552 = vld [vmem:[#allocation7 + $0xf8] sm:$0xff]
    %v1553 = vld [vmem:[#allocation7 + $0x100] sm:$0xff]
    %v1554 = vld [vmem:[#allocation7 + $0x108] sm:$0xff]
    %v1555 = vld [vmem:[#allocation7 + $0x110] sm:$0xff]
    %v1556 = vld [vmem:[#allocation7 + $0x118] sm:$0xff]
    %v1557 = vld [vmem:[#allocation7 + $0x120] sm:$0xff]
    %v1558 = vld [vmem:[#allocation7 + $0x128] sm:$0xff]
    %v1559 = vld [vmem:[#allocation7 + $0x130] sm:$0xff]
    %v1560 = vld [vmem:[#allocation7 + $0x138] sm:$0xff]
    %v1561 = vld [vmem:[#allocation7 + $0x140] sm:$0xff]
    %v1562 = vld [vmem:[#allocation7 + $0x148] sm:$0xff]
    %v1563 = vld [vmem:[#allocation7 + $0x150] sm:$0xff]
    %v1564 = vld [vmem:[#allocation7 + $0x158] sm:$0xff]
    %v1565 = vld [vmem:[#allocation7 + $0x160] sm:$0xff]
    %v1566 = vld [vmem:[#allocation7 + $0x168] sm:$0xff]
    %v1567 = vld [vmem:[#allocation7 + $0x170] sm:$0xff]
    %v1568 = vld [vmem:[#allocation7 + $0x178] sm:$0xff]
    %v1569 = vld [vmem:[#allocation7 + $0x180] sm:$0xff]
    %v1570 = vld [vmem:[#allocation7 + $0x188] sm:$0xff]
    %v1571 = vld [vmem:[#allocation7 + $0x190] sm:$0xff]
    %v1572 = vld [vmem:[#allocation7 + $0x198] sm:$0xff]
    %v1573 = vld [vmem:[#allocation7 + $0x1a0] sm:$0xff]
    %v1574 = vld [vmem:[#allocation7 + $0x1a8] sm:$0xff]
    %v1575 = vld [vmem:[#allocation7 + $0x1b0] sm:$0xff]
    %v1576 = vld [vmem:[#allocation7 + $0x1b8] sm:$0xff]
    %v1577 = vld [vmem:[#allocation7 + $0x1c0] sm:$0xff]
    %v1578 = vld [vmem:[#allocation7 + $0x1c8] sm:$0xff]
    %v1579 = vld [vmem:[#allocation7 + $0x1d0] sm:$0xff]
    %v1580 = vld [vmem:[#allocation7 + $0x1d8] sm:$0xff]
    %v1581 = vld [vmem:[#allocation7 + $0x1e0] sm:$0xff]
    %v1582 = vld [vmem:[#allocation7 + $0x1e8] sm:$0xff]
    %v1583 = vld [vmem:[#allocation7 + $0x1f0] sm:$0xff]
    %v1584 = vld [vmem:[#allocation7 + $0x1f8] sm:$0xff]
    %1585 = vmatprep.subr.mxu0 %v1522
    %1586 = vmatpush1.msra.mxu0 %v1521
    %1587 = vmatprep.subr.mxu0 %v1526
    %1588 = vmatpush1.msra.mxu0 %v1525
    %1589 = vmatprep.subr.mxu0 %v1530
    %1590 = vmatpush1.msra.mxu0 %v1529
    %1591 = vmatprep.subr.mxu0 %v1534
    %1592 = vmatpush1.msra.mxu0 %v1533
    %1593 = vmatprep.subr.mxu0 %v1538
    %1594 = vmatpush1.msra.mxu0 %v1537
    %1595 = vmatprep.subr.mxu0 %v1542
    %1596 = vmatpush1.msra.mxu0 %v1541
    %1597 = vmatprep.subr.mxu0 %v1546
    %1598 = vmatpush1.msra.mxu0 %v1545
    %1599 = vmatprep.subr.mxu0 %v1550
    %1600 = vmatpush1.msra.mxu0 %v1549
    %1601 = vmatprep.subr.mxu0 %v1554
    %1602 = vmatpush1.msra.mxu0 %v1553
    %1603 = vmatprep.subr.mxu0 %v1558
    %1604 = vmatpush1.msra.mxu0 %v1557
    %1605 = vmatprep.subr.mxu0 %v1562
    %1606 = vmatpush1.msra.mxu0 %v1561
    %1607 = vmatprep.subr.mxu0 %v1566
    %1608 = vmatpush1.msra.mxu0 %v1565
    %1609 = vmatprep.subr.mxu0 %v1570
    %1610 = vmatpush1.msra.mxu0 %v1569
    %1611 = vmatprep.subr.mxu0 %v1574
    %1612 = vmatpush1.msra.mxu0 %v1573
    %1613 = vmatprep.subr.mxu0 %v1578
    %1614 = vmatpush1.msra.mxu0 %v1577
    %1615 = vmatprep.subr.mxu0 %v1582
    %1616 = vmatpush1.msra.mxu0 %v1581
    %1617 = vmatprep.subr.mxu0 0.0
    %1618 = vmatpush1.msra.mxu0 0.0
    %1619 = vmatprep.subr.mxu0 0.0
    %1620 = vmatpush1.msra.mxu0 0.0
    %1621 = vmatprep.subr.mxu0 0.0
    %1622 = vmatpush1.msra.mxu0 0.0
    %1623 = vmatprep.subr.mxu0 0.0
    %1624 = vmatpush1.msra.mxu0 0.0
    %1625 = vmatprep.subr.mxu0 0.0
    %1626 = vmatpush1.msra.mxu0 0.0
    %1627 = vmatprep.subr.mxu0 0.0
    %1628 = vmatpush1.msra.mxu0 0.0
    %1629 = vmatprep.subr.mxu0 0.0
    %1630 = vmatpush1.msra.mxu0 0.0
    %1631 = vmatprep.subr.mxu0 0.0
    %1632 = vmatpush1.msra.mxu0 0.0
    %1633 = vmatprep.subr.mxu0 0.0
    %1634 = vmatpush1.msra.mxu0 0.0
    %1635 = vmatprep.subr.mxu0 0.0
    %1636 = vmatpush1.msra.mxu0 0.0
    %1637 = vmatprep.subr.mxu0 0.0
    %1638 = vmatpush1.msra.mxu0 0.0
    %1639 = vmatprep.subr.mxu0 0.0
    %1640 = vmatpush1.msra.mxu0 0.0
    %1641 = vmatprep.subr.mxu0 0.0
    %1642 = vmatpush1.msra.mxu0 0.0
    %1643 = vmatprep.subr.mxu0 0.0
    %1644 = vmatpush1.msra.mxu0 0.0
    %1645 = vmatprep.subr.mxu0 0.0
    %1646 = vmatpush1.msra.mxu0 0.0
    %1647 = vmatprep.subr.mxu0 0.0
    %1648 = vmatpush1.msra.mxu0 0.0
    %1649 = vmatprep.mubr.f32.mxu0 0.0
    %1650 = vmatmul.mubr.f32.gmra.mrb[0].mxu0 %v1514
    %v1651 = vpop.f32.mrb[0].mxu0
    %v1652 = vadd.f32 0.0, %v1651
    %v1653 = vpop.f32.mrb[0].mxu0
    %v1654 = vadd.f32 0.0, %v1653
    %1655 = vdwg.mxu0
    %1656 = vmatprep.subr.mxu0 %v1524
    %1657 = vmatpush1.msra.mxu0 %v1523
    %1658 = vmatprep.subr.mxu0 %v1528
    %1659 = vmatpush1.msra.mxu0 %v1527
    %1660 = vmatprep.subr.mxu0 %v1532
    %1661 = vmatpush1.msra.mxu0 %v1531
    %1662 = vmatprep.subr.mxu0 %v1536
    %1663 = vmatpush1.msra.mxu0 %v1535
    %1664 = vmatprep.subr.mxu0 %v1540
    %1665 = vmatpush1.msra.mxu0 %v1539
    %1666 = vmatprep.subr.mxu0 %v1544
    %1667 = vmatpush1.msra.mxu0 %v1543
    %1668 = vmatprep.subr.mxu0 %v1548
    %1669 = vmatpush1.msra.mxu0 %v1547
    %1670 = vmatprep.subr.mxu0 %v1552
    %1671 = vmatpush1.msra.mxu0 %v1551
    %1672 = vmatprep.subr.mxu0 %v1556
    %1673 = vmatpush1.msra.mxu0 %v1555
    %1674 = vmatprep.subr.mxu0 %v1560
    %1675 = vmatpush1.msra.mxu0 %v1559
    %1676 = vmatprep.subr.mxu0 %v1564
    %1677 = vmatpush1.msra.mxu0 %v1563
    %1678 = vmatprep.subr.mxu0 %v1568
    %1679 = vmatpush1.msra.mxu0 %v1567
    %1680 = vmatprep.subr.mxu0 %v1572
    %1681 = vmatpush1.msra.mxu0 %v1571
    %1682 = vmatprep.subr.mxu0 %v1576
    %1683 = vmatpush1.msra.mxu0 %v1575
    %1684 = vmatprep.subr.mxu0 %v1580
    %1685 = vmatpush1.msra.mxu0 %v1579
    %1686 = vmatprep.subr.mxu0 %v1584
    %1687 = vmatpush1.msra.mxu0 %v1583
    %1688 = vmatprep.subr.mxu0 0.0
    %1689 = vmatpush1.msra.mxu0 0.0
    %1690 = vmatprep.subr.mxu0 0.0
    %1691 = vmatpush1.msra.mxu0 0.0
    %1692 = vmatprep.subr.mxu0 0.0
    %1693 = vmatpush1.msra.mxu0 0.0
    %1694 = vmatprep.subr.mxu0 0.0
    %1695 = vmatpush1.msra.mxu0 0.0
    %1696 = vmatprep.subr.mxu0 0.0
    %1697 = vmatpush1.msra.mxu0 0.0
    %1698 = vmatprep.subr.mxu0 0.0
    %1699 = vmatpush1.msra.mxu0 0.0
    %1700 = vmatprep.subr.mxu0 0.0
    %1701 = vmatpush1.msra.mxu0 0.0
    %1702 = vmatprep.subr.mxu0 0.0
    %1703 = vmatpush1.msra.mxu0 0.0
    %1704 = vmatprep.subr.mxu0 0.0
    %1705 = vmatpush1.msra.mxu0 0.0
    %1706 = vmatprep.subr.mxu0 0.0
    %1707 = vmatpush1.msra.mxu0 0.0
    %1708 = vmatprep.subr.mxu0 0.0
    %1709 = vmatpush1.msra.mxu0 0.0
    %1710 = vmatprep.subr.mxu0 0.0
    %1711 = vmatpush1.msra.mxu0 0.0
    %1712 = vmatprep.subr.mxu0 0.0
    %1713 = vmatpush1.msra.mxu0 0.0
    %1714 = vmatprep.subr.mxu0 0.0
    %1715 = vmatpush1.msra.mxu0 0.0
    %1716 = vmatprep.subr.mxu0 0.0
    %1717 = vmatpush1.msra.mxu0 0.0
    %1718 = vmatprep.subr.mxu0 0.0
    %1719 = vmatpush1.msra.mxu0 0.0
    %1720 = vmatprep.mubr.f32.mxu0 0.0
    %1721 = vmatmul.mubr.f32.gmra.mrb[0].mxu0 %v1514
    %v1722 = vpop.f32.mrb[0].mxu0
    %v1723 = vadd.f32 0.0, %v1722
    %v1724 = vpop.f32.mrb[0].mxu0
    %v1725 = vadd.f32 0.0, %v1724
    %1726 = vdwg.mxu0
    %v1727 = vadd.f32 %v1517, %v1652
    %v1728 = vadd.f32 %v1518, %v1654
    %v1729 = vadd.f32 %v1519, %v1723
    %v1730 = vadd.f32 %v1520, %v1725
    %v1731 = vxor.u32 %v1727, 2147483648
    %v1732 = vmul.f32 %v1731, 1.442695
    %v1733 = vpow.pop %v1732
    %v1734 = vadd.f32 %v1733, 1.0
    %v1735 = vrcp.pop %v1734
    %v1736 = vmul.f32 1.0, %v1735
    %v1737 = vxor.u32 %v1728, 2147483648
    %v1738 = vmul.f32 %v1737, 1.442695
    %v1739 = vpow.pop %v1738
    %v1740 = vadd.f32 %v1739, 1.0
    %v1741 = vrcp.pop %v1740
    %v1742 = vmul.f32 1.0, %v1741
    %v1743 = vtanh.pop %v1729
    %v1744 = vxor.u32 %v1730, 2147483648
    %v1745 = vmul.f32 %v1744, 1.442695
    %v1746 = vpow.pop %v1745
    %v1747 = vadd.f32 %v1746, 1.0
    %v1748 = vrcp.pop %v1747
    %v1749 = vmul.f32 1.0, %v1748
    %v1750 = vmul.f32 %v1742, %v1515
    %v1751 = vmul.f32 %v1736, %v1743
    %v1752 = vadd.f32 %v1750, %v1751
    %v1753 = vtanh.pop %v1752
    %v1754 = vmul.f32 %v1749, %v1753
    %1755 = vst [vmem:[#allocation2] sm:$0xff] %v1754
    %1756 = vst [vmem:[#allocation3] sm:$0xff] %v1752
    %s1757 = scalar_lea.vmem [#allocation9], 48
    %1758 = vst [vmem:[%s1757] sm:$0xff] %v1754
    %v1759 = vld [vmem:[#allocation2] sm:$0xff]
    %v1760 = vld [vmem:[#allocation3] sm:$0xff]
    %s1761 = scalar_lea.vmem [#allocation4], 224
    %v1762 = vld [vmem:[%s1761] sm:$0xff]
    %v1763 = vld [vmem:[%s1761 + $0x8] sm:$0xff]
    %v1764 = vld [vmem:[%s1761 + $0x10] sm:$0xff]
    %v1765 = vld [vmem:[%s1761 + $0x18] sm:$0xff]
    %v1766 = vld [vmem:[#allocation7] sm:$0xff]
    %v1767 = vld [vmem:[#allocation7 + $0x8] sm:$0xff]
    %v1768 = vld [vmem:[#allocation7 + $0x10] sm:$0xff]
    %v1769 = vld [vmem:[#allocation7 + $0x18] sm:$0xff]
    %v1770 = vld [vmem:[#allocation7 + $0x20] sm:$0xff]
    %v1771 = vld [vmem:[#allocation7 + $0x28] sm:$0xff]
    %v1772 = vld [vmem:[#allocation7 + $0x30] sm:$0xff]
    %v1773 = vld [vmem:[#allocation7 + $0x38] sm:$0xff]
    %v1774 = vld [vmem:[#allocation7 + $0x40] sm:$0xff]
    %v1775 = vld [vmem:[#allocation7 + $0x48] sm:$0xff]
    %v1776 = vld [vmem:[#allocation7 + $0x50] sm:$0xff]
    %v1777 = vld [vmem:[#allocation7 + $0x58] sm:$0xff]
    %v1778 = vld [vmem:[#allocation7 + $0x60] sm:$0xff]
    %v1779 = vld [vmem:[#allocation7 + $0x68] sm:$0xff]
    %v1780 = vld [vmem:[#allocation7 + $0x70] sm:$0xff]
    %v1781 = vld [vmem:[#allocation7 + $0x78] sm:$0xff]
    %v1782 = vld [vmem:[#allocation7 + $0x80] sm:$0xff]
    %v1783 = vld [vmem:[#allocation7 + $0x88] sm:$0xff]
    %v1784 = vld [vmem:[#allocation7 + $0x90] sm:$0xff]
    %v1785 = vld [vmem:[#allocation7 + $0x98] sm:$0xff]
    %v1786 = vld [vmem:[#allocation7 + $0xa0] sm:$0xff]
    %v1787 = vld [vmem:[#allocation7 + $0xa8] sm:$0xff]
    %v1788 = vld [vmem:[#allocation7 + $0xb0] sm:$0xff]
    %v1789 = vld [vmem:[#allocation7 + $0xb8] sm:$0xff]
    %v1790 = vld [vmem:[#allocation7 + $0xc0] sm:$0xff]
    %v1791 = vld [vmem:[#allocation7 + $0xc8] sm:$0xff]
    %v1792 = vld [vmem:[#allocation7 + $0xd0] sm:$0xff]
    %v1793 = vld [vmem:[#allocation7 + $0xd8] sm:$0xff]
    %v1794 = vld [vmem:[#allocation7 + $0xe0] sm:$0xff]
    %v1795 = vld [vmem:[#allocation7 + $0xe8] sm:$0xff]
    %v1796 = vld [vmem:[#allocation7 + $0xf0] sm:$0xff]
    %v1797 = vld [vmem:[#allocation7 + $0xf8] sm:$0xff]
    %v1798 = vld [vmem:[#allocation7 + $0x100] sm:$0xff]
    %v1799 = vld [vmem:[#allocation7 + $0x108] sm:$0xff]
    %v1800 = vld [vmem:[#allocation7 + $0x110] sm:$0xff]
    %v1801 = vld [vmem:[#allocation7 + $0x118] sm:$0xff]
    %v1802 = vld [vmem:[#allocation7 + $0x120] sm:$0xff]
    %v1803 = vld [vmem:[#allocation7 + $0x128] sm:$0xff]
    %v1804 = vld [vmem:[#allocation7 + $0x130] sm:$0xff]
    %v1805 = vld [vmem:[#allocation7 + $0x138] sm:$0xff]
    %v1806 = vld [vmem:[#allocation7 + $0x140] sm:$0xff]
    %v1807 = vld [vmem:[#allocation7 + $0x148] sm:$0xff]
    %v1808 = vld [vmem:[#allocation7 + $0x150] sm:$0xff]
    %v1809 = vld [vmem:[#allocation7 + $0x158] sm:$0xff]
    %v1810 = vld [vmem:[#allocation7 + $0x160] sm:$0xff]
    %v1811 = vld [vmem:[#allocation7 + $0x168] sm:$0xff]
    %v1812 = vld [vmem:[#allocation7 + $0x170] sm:$0xff]
    %v1813 = vld [vmem:[#allocation7 + $0x178] sm:$0xff]
    %v1814 = vld [vmem:[#allocation7 + $0x180] sm:$0xff]
    %v1815 = vld [vmem:[#allocation7 + $0x188] sm:$0xff]
    %v1816 = vld [vmem:[#allocation7 + $0x190] sm:$0xff]
    %v1817 = vld [vmem:[#allocation7 + $0x198] sm:$0xff]
    %v1818 = vld [vmem:[#allocation7 + $0x1a0] sm:$0xff]
    %v1819 = vld [vmem:[#allocation7 + $0x1a8] sm:$0xff]
    %v1820 = vld [vmem:[#allocation7 + $0x1b0] sm:$0xff]
    %v1821 = vld [vmem:[#allocation7 + $0x1b8] sm:$0xff]
    %v1822 = vld [vmem:[#allocation7 + $0x1c0] sm:$0xff]
    %v1823 = vld [vmem:[#allocation7 + $0x1c8] sm:$0xff]
    %v1824 = vld [vmem:[#allocation7 + $0x1d0] sm:$0xff]
    %v1825 = vld [vmem:[#allocation7 + $0x1d8] sm:$0xff]
    %v1826 = vld [vmem:[#allocation7 + $0x1e0] sm:$0xff]
    %v1827 = vld [vmem:[#allocation7 + $0x1e8] sm:$0xff]
    %v1828 = vld [vmem:[#allocation7 + $0x1f0] sm:$0xff]
    %v1829 = vld [vmem:[#allocation7 + $0x1f8] sm:$0xff]
    %1830 = vmatprep.subr.mxu0 %v1767
    %1831 = vmatpush1.msra.mxu0 %v1766
    %1832 = vmatprep.subr.mxu0 %v1771
    %1833 = vmatpush1.msra.mxu0 %v1770
    %1834 = vmatprep.subr.mxu0 %v1775
    %1835 = vmatpush1.msra.mxu0 %v1774
    %1836 = vmatprep.subr.mxu0 %v1779
    %1837 = vmatpush1.msra.mxu0 %v1778
    %1838 = vmatprep.subr.mxu0 %v1783
    %1839 = vmatpush1.msra.mxu0 %v1782
    %1840 = vmatprep.subr.mxu0 %v1787
    %1841 = vmatpush1.msra.mxu0 %v1786
    %1842 = vmatprep.subr.mxu0 %v1791
    %1843 = vmatpush1.msra.mxu0 %v1790
    %1844 = vmatprep.subr.mxu0 %v1795
    %1845 = vmatpush1.msra.mxu0 %v1794
    %1846 = vmatprep.subr.mxu0 %v1799
    %1847 = vmatpush1.msra.mxu0 %v1798
    %1848 = vmatprep.subr.mxu0 %v1803
    %1849 = vmatpush1.msra.mxu0 %v1802
    %1850 = vmatprep.subr.mxu0 %v1807
    %1851 = vmatpush1.msra.mxu0 %v1806
    %1852 = vmatprep.subr.mxu0 %v1811
    %1853 = vmatpush1.msra.mxu0 %v1810
    %1854 = vmatprep.subr.mxu0 %v1815
    %1855 = vmatpush1.msra.mxu0 %v1814
    %1856 = vmatprep.subr.mxu0 %v1819
    %1857 = vmatpush1.msra.mxu0 %v1818
    %1858 = vmatprep.subr.mxu0 %v1823
    %1859 = vmatpush1.msra.mxu0 %v1822
    %1860 = vmatprep.subr.mxu0 %v1827
    %1861 = vmatpush1.msra.mxu0 %v1826
    %1862 = vmatprep.subr.mxu0 0.0
    %1863 = vmatpush1.msra.mxu0 0.0
    %1864 = vmatprep.subr.mxu0 0.0
    %1865 = vmatpush1.msra.mxu0 0.0
    %1866 = vmatprep.subr.mxu0 0.0
    %1867 = vmatpush1.msra.mxu0 0.0
    %1868 = vmatprep.subr.mxu0 0.0
    %1869 = vmatpush1.msra.mxu0 0.0
    %1870 = vmatprep.subr.mxu0 0.0
    %1871 = vmatpush1.msra.mxu0 0.0
    %1872 = vmatprep.subr.mxu0 0.0
    %1873 = vmatpush1.msra.mxu0 0.0
    %1874 = vmatprep.subr.mxu0 0.0
    %1875 = vmatpush1.msra.mxu0 0.0
    %1876 = vmatprep.subr.mxu0 0.0
    %1877 = vmatpush1.msra.mxu0 0.0
    %1878 = vmatprep.subr.mxu0 0.0
    %1879 = vmatpush1.msra.mxu0 0.0
    %1880 = vmatprep.subr.mxu0 0.0
    %1881 = vmatpush1.msra.mxu0 0.0
    %1882 = vmatprep.subr.mxu0 0.0
    %1883 = vmatpush1.msra.mxu0 0.0
    %1884 = vmatprep.subr.mxu0 0.0
    %1885 = vmatpush1.msra.mxu0 0.0
    %1886 = vmatprep.subr.mxu0 0.0
    %1887 = vmatpush1.msra.mxu0 0.0
    %1888 = vmatprep.subr.mxu0 0.0
    %1889 = vmatpush1.msra.mxu0 0.0
    %1890 = vmatprep.subr.mxu0 0.0
    %1891 = vmatpush1.msra.mxu0 0.0
    %1892 = vmatprep.subr.mxu0 0.0
    %1893 = vmatpush1.msra.mxu0 0.0
    %1894 = vmatprep.mubr.f32.mxu0 0.0
    %1895 = vmatmul.mubr.f32.gmra.mrb[0].mxu0 %v1759
    %v1896 = vpop.f32.mrb[0].mxu0
    %v1897 = vadd.f32 0.0, %v1896
    %v1898 = vpop.f32.mrb[0].mxu0
    %v1899 = vadd.f32 0.0, %v1898
    %1900 = vdwg.mxu0
    %1901 = vmatprep.subr.mxu0 %v1769
    %1902 = vmatpush1.msra.mxu0 %v1768
    %1903 = vmatprep.subr.mxu0 %v1773
    %1904 = vmatpush1.msra.mxu0 %v1772
    %1905 = vmatprep.subr.mxu0 %v1777
    %1906 = vmatpush1.msra.mxu0 %v1776
    %1907 = vmatprep.subr.mxu0 %v1781
    %1908 = vmatpush1.msra.mxu0 %v1780
    %1909 = vmatprep.subr.mxu0 %v1785
    %1910 = vmatpush1.msra.mxu0 %v1784
    %1911 = vmatprep.subr.mxu0 %v1789
    %1912 = vmatpush1.msra.mxu0 %v1788
    %1913 = vmatprep.subr.mxu0 %v1793
    %1914 = vmatpush1.msra.mxu0 %v1792
    %1915 = vmatprep.subr.mxu0 %v1797
    %1916 = vmatpush1.msra.mxu0 %v1796
    %1917 = vmatprep.subr.mxu0 %v1801
    %1918 = vmatpush1.msra.mxu0 %v1800
    %1919 = vmatprep.subr.mxu0 %v1805
    %1920 = vmatpush1.msra.mxu0 %v1804
    %1921 = vmatprep.subr.mxu0 %v1809
    %1922 = vmatpush1.msra.mxu0 %v1808
    %1923 = vmatprep.subr.mxu0 %v1813
    %1924 = vmatpush1.msra.mxu0 %v1812
    %1925 = vmatprep.subr.mxu0 %v1817
    %1926 = vmatpush1.msra.mxu0 %v1816
    %1927 = vmatprep.subr.mxu0 %v1821
    %1928 = vmatpush1.msra.mxu0 %v1820
    %1929 = vmatprep.subr.mxu0 %v1825
    %1930 = vmatpush1.msra.mxu0 %v1824
    %1931 = vmatprep.subr.mxu0 %v1829
    %1932 = vmatpush1.msra.mxu0 %v1828
    %1933 = vmatprep.subr.mxu0 0.0
    %1934 = vmatpush1.msra.mxu0 0.0
    %1935 = vmatprep.subr.mxu0 0.0
    %1936 = vmatpush1.msra.mxu0 0.0
    %1937 = vmatprep.subr.mxu0 0.0
    %1938 = vmatpush1.msra.mxu0 0.0
    %1939 = vmatprep.subr.mxu0 0.0
    %1940 = vmatpush1.msra.mxu0 0.0
    %1941 = vmatprep.subr.mxu0 0.0
    %1942 = vmatpush1.msra.mxu0 0.0
    %1943 = vmatprep.subr.mxu0 0.0
    %1944 = vmatpush1.msra.mxu0 0.0
    %1945 = vmatprep.subr.mxu0 0.0
    %1946 = vmatpush1.msra.mxu0 0.0
    %1947 = vmatprep.subr.mxu0 0.0
    %1948 = vmatpush1.msra.mxu0 0.0
    %1949 = vmatprep.subr.mxu0 0.0
    %1950 = vmatpush1.msra.mxu0 0.0
    %1951 = vmatprep.subr.mxu0 0.0
    %1952 = vmatpush1.msra.mxu0 0.0
    %1953 = vmatprep.subr.mxu0 0.0
    %1954 = vmatpush1.msra.mxu0 0.0
    %1955 = vmatprep.subr.mxu0 0.0
    %1956 = vmatpush1.msra.mxu0 0.0
    %1957 = vmatprep.subr.mxu0 0.0
    %1958 = vmatpush1.msra.mxu0 0.0
    %1959 = vmatprep.subr.mxu0 0.0
    %1960 = vmatpush1.msra.mxu0 0.0
    %1961 = vmatprep.subr.mxu0 0.0
    %1962 = vmatpush1.msra.mxu0 0.0
    %1963 = vmatprep.subr.mxu0 0.0
    %1964 = vmatpush1.msra.mxu0 0.0
    %1965 = vmatprep.mubr.f32.mxu0 0.0
    %1966 = vmatmul.mubr.f32.gmra.mrb[0].mxu0 %v1759
    %v1967 = vpop.f32.mrb[0].mxu0
    %v1968 = vadd.f32 0.0, %v1967
    %v1969 = vpop.f32.mrb[0].mxu0
    %v1970 = vadd.f32 0.0, %v1969
    %1971 = vdwg.mxu0
    %v1972 = vadd.f32 %v1762, %v1897
    %v1973 = vadd.f32 %v1763, %v1899
    %v1974 = vadd.f32 %v1764, %v1968
    %v1975 = vadd.f32 %v1765, %v1970
    %v1976 = vxor.u32 %v1972, 2147483648
    %v1977 = vmul.f32 %v1976, 1.442695
    %v1978 = vpow.pop %v1977
    %v1979 = vadd.f32 %v1978, 1.0
    %v1980 = vrcp.pop %v1979
    %v1981 = vmul.f32 1.0, %v1980
    %v1982 = vxor.u32 %v1973, 2147483648
    %v1983 = vmul.f32 %v1982, 1.442695
    %v1984 = vpow.pop %v1983
    %v1985 = vadd.f32 %v1984, 1.0
    %v1986 = vrcp.pop %v1985
    %v1987 = vmul.f32 1.0, %v1986
    %v1988 = vtanh.pop %v1974
    %v1989 = vxor.u32 %v1975, 2147483648
    %v1990 = vmul.f32 %v1989, 1.442695
    %v1991 = vpow.pop %v1990
    %v1992 = vadd.f32 %v1991, 1.0
    %v1993 = vrcp.pop %v1992
    %v1994 = vmul.f32 1.0, %v1993
    %v1995 = vmul.f32 %v1987, %v1760
    %v1996 = vmul.f32 %v1981, %v1988
    %v1997 = vadd.f32 %v1995, %v1996
    %v1998 = vtanh.pop %v1997
    %v1999 = vmul.f32 %v1994, %v1998
    %2000 = vst [vmem:[#allocation2] sm:$0xff] %v1999
    %2001 = vst [vmem:[#allocation3] sm:$0xff] %v1997
    %s2002 = scalar_lea.vmem [#allocation9], 56
    %2003 = vst [vmem:[%s2002] sm:$0xff] %v1999
    // Predicated region
    $region22: #{encoder_rnn_forward.2} parent=1 // pred_check
      _
    $region23: #{encoder_rnn_forward.2} parent=1 // pred_check_branch
      %2005 = sbr.rel (0) target = $region25
    $region24: #{encoder_rnn_forward.2} parent=1 // pred_region
      %s2007 = ssub.s32 1024, 1024
      %2008 = vsyncadd [#allocation6], %s2007
      %s2009 = sshll.u32 [#allocation9], 4
      %s2010 = int_to_ptr.vmem [resolvable:$true] %s2009
      %2015 = dma.vmem_to_hbm [thread:$0]  %s2010, 1024, %s2, [#allocation6], 128, 128, 8
    $region25: #{encoder_rnn_forward.2} parent=1 // pred_fallthru
      _
    // Predicated region
    $region26: #{encoder_rnn_forward.2} parent=1 // pred_check
      _
    $region27: #{encoder_rnn_forward.2} parent=1 // pred_check_branch
      %2017 = sbr.rel (0) target = $region29
    $region28: #{encoder_rnn_forward.2} parent=1 // pred_region
      %2018 = dma.done [#allocation6], 1024
    $region29: #{encoder_rnn_forward.2} parent=1 // pred_fallthru
      _
    %2019 = vsyncpa [#allocation5], 1
    %2020 = vsyncpa [#allocation8], 1
    %2021 = vsyncpa [#allocation6], 1

</llo_original>
